<compile_context>
chip_gen: v7x
topology: tpu7x:2x2x1
jax: 0.10.0
libtpu: 0.0.40
codegen_flags: <defaults>
</compile_context>

<pallas_src>
import functools

import jax
import jax.numpy as jnp
from jax.experimental import pallas as pl
from jax.experimental.pallas import tpu as pltpu

NODE_F = 4        # node_feature_size
EDGE_F = 3        # edge_feature_size
HIDDEN = 32       # mlp_hidden_layer_size
# mlp_n_layers = 2 -> Linear(D,H), ReLU, Linear(H,H), ReLU, Linear(H, NODE_F)
D_IN = NODE_F + NODE_F + EDGE_F   # 11


# ---------------------------------------------------------------------------
# Fused kernel: per batch element, run the MLP on all N*N edge rows and do the
# masked-mean aggregation over neighbors j in the same body.
# ---------------------------------------------------------------------------
def fused_gnn_mean_kernel(N, x_ref, adj_ref, w1_ref, b1_ref, w2_ref, b2_ref,
                          w3_ref, b3_ref, out_ref):
    # x_ref: (N*N, D) -- all (i, j) edge rows for this batch element.
    x = x_ref[...]
    h = jnp.dot(x, w1_ref[...], preferred_element_type=jnp.float32) + b1_ref[...]
    h = jnp.maximum(h, 0.0)
    h = jnp.dot(h, w2_ref[...], preferred_element_type=jnp.float32) + b2_ref[...]
    h = jnp.maximum(h, 0.0)
    # Third layer pre-sliced to the single output column forward() consumes.
    o = jnp.dot(h, w3_ref[...], preferred_element_type=jnp.float32) + b3_ref[...]   # (N*N, 1)

    # Masked mean over neighbors j:
    #   agg[i] = sum_j o[i*N + j] * adj[i, j] / sum_j adj[i, j]
    # Build the (N, N*N) "segment selection" weights p_adj[i, i*N+j] = adj[i, j]
    # with iota/compare (cheap VPU work), then reduce with one matvec + lane sum.
    adj_row = adj_ref[...]                                            # (1, N*N)
    row_ids = jax.lax.broadcasted_iota(jnp.int32, (N, N * N), 0)
    col_ids = jax.lax.broadcasted_iota(jnp.int32, (N, N * N), 1)
    sel = jnp.logical_and(col_ids >= row_ids * N, col_ids < (row_ids + 1) * N)
    p_adj = jnp.where(sel, adj_row, 0.0)                              # (N, N*N)
    num = jnp.dot(p_adj, o, preferred_element_type=jnp.float32)       # (N, 1)
    den = jnp.sum(p_adj, axis=-1, keepdims=True)                      # (N, 1)
    # den == 0 (isolated node) yields nan, matching PyTorch's 0/0 behaviour.
    out_ref[...] = (num * pl.reciprocal(den)).astype(out_ref.dtype)


def fused_gnn_mean(x_flat, adj_flat, params, N):
    """x_flat: (B, N*N, D), adj_flat: (B, 1, N*N) -> aggregated (B, N, 1)."""
    B, M, D = x_flat.shape
    w1, b1, w2, b2, w3c, b3c = params
    H = w1.shape[1]
    kernel = functools.partial(fused_gnn_mean_kernel, N)
    full = lambda b: (0, 0)   # weights fully resident across the batch grid
    return pl.pallas_call(
        kernel,
        out_shape=jax.ShapeDtypeStruct((B, N, 1), jnp.float32),
        grid_spec=pltpu.PrefetchScalarGridSpec(
            num_scalar_prefetch=0,
            grid=(B,),
            in_specs=[
                pl.BlockSpec((None, M, D), lambda b: (b, 0, 0)),   # features rows
                pl.BlockSpec((None, 1, M), lambda b: (b, 0, 0)),   # adjacency row
                pl.BlockSpec((D, H), full),
                pl.BlockSpec((1, H), full),
                pl.BlockSpec((H, H), full),
                pl.BlockSpec((1, H), full),
                pl.BlockSpec((H, 1), full),
                pl.BlockSpec((1, 1), full),
            ],
            out_specs=pl.BlockSpec((None, N, 1), lambda b: (b, 0, 0)),
        ),
        compiler_params=pltpu.CompilerParams(dimension_semantics=("parallel",)),
    )(x_flat, adj_flat, w1, b1, w2, b2, w3c, b3c)


# ---------------------------------------------------------------------------
# Full forward pass (mean aggregation).
# ---------------------------------------------------------------------------
def simple_gnn_layer(features, adj_matrix, params):
    B, N, _, D = features.shape
    w1, b1, w2, b2, w3, b3 = params
    # Free HBM reshapes (layout plumbing only).
    x_flat = features.reshape(B, N * N, D)          # flatten(0, -2) per batch
    adj_flat = adj_matrix.reshape(B, 1, N * N)
    # Only column 0 of the third layer is used downstream.
    w3c, b3c = w3[:, :1], b3[:, :1]
    agg = fused_gnn_mean(x_flat, adj_flat, (w1, b1, w2, b2, w3c, b3c), N)  # (B, N, 1)
    aggregated = agg[..., 0]                                               # (B, N)
    # aggregated.unsqueeze(-1).repeat(1,1,N).unsqueeze(-1)
    agg1 = jnp.broadcast_to(aggregated[:, :, None], (B, N, N))[..., None]  # (B,N,N,1)
    agg1_t = jnp.transpose(agg1, (0, 2, 1, 3))
    return jnp.concatenate([agg1, agg1_t, features[..., 2:3]], axis=-1)    # (B,N,N,3)


# ---------------------------------------------------------------------------
# Reference (pure JAX) for correctness checking -- uses the FULL w3/b3.
# ---------------------------------------------------------------------------
def reference_forward(features, adj_matrix, params):
    w1, b1, w2, b2, w3, b3 = params
    B, N, _, D = features.shape
    x = features.reshape(-1, D)
    h = jnp.maximum(x @ w1 + b1, 0.0)
    h = jnp.maximum(h @ w2 + b2, 0.0)
    o = h @ w3 + b3
    node_output = o.reshape(B, N, N, -1)[..., 0]
    aggregated = jnp.sum(node_output * adj_matrix, axis=-1) / jnp.sum(adj_matrix, axis=-1)
    agg1 = jnp.broadcast_to(aggregated[:, :, None], (B, N, N))[..., None]
    return jnp.concatenate([agg1, jnp.transpose(agg1, (0, 2, 1, 3)),
                            features[..., 2:3]], axis=-1)


def init_params(key):
    """PyTorch nn.Linear-style uniform(-1/sqrt(fan_in), 1/sqrt(fan_in)) init."""
    ks = jax.random.split(key, 6)

    def lin(kw, kb, fan_in, fan_out):
        bound = 1.0 / jnp.sqrt(jnp.float32(fan_in))
        w = jax.random.uniform(kw, (fan_in, fan_out), jnp.float32, -bound, bound)
        b = jax.random.uniform(kb, (1, fan_out), jnp.float32, -bound, bound)
        return w, b

    w1, b1 = lin(ks[0], ks[1], D_IN, HIDDEN)
    w2, b2 = lin(ks[2], ks[3], HIDDEN, HIDDEN)
    w3, b3 = lin(ks[4], ks[5], HIDDEN, NODE_F)
    return (w1, b1, w2, b2, w3, b3)


if __name__ == "__main__":
    key = jax.random.PRNGKey(0)
    k_feat, k_adj, k_param = jax.random.split(key, 3)

    B, N = 2, 16
    features = jax.random.normal(k_feat, (B, N, N, D_IN), jnp.float32)
    # 0/1 adjacency with self-loops so every row has at least one neighbor
    # (isolated nodes would be nan in both PyTorch and this kernel).
    adj = (jax.random.uniform(k_adj, (B, N, N)) < 0.5).astype(jnp.float32)
    adj = jnp.maximum(adj, jnp.eye(N, dtype=jnp.float32)[None, :, :])

    params = init_params(k_param)

    fwd = jax.jit(simple_gnn_layer)
    out = fwd(features, adj, params)
    out = jax.block_until_ready(out)

    ref = reference_forward(features, adj, params)
    assert out.shape == (B, N, N, 3), out.shape
    assert jnp.allclose(out, ref, atol=1e-4, rtol=1e-4), "mismatch vs reference"

    print("KERNEL_OK")
</pallas_src>

<mosaic_0001>
module attributes {stable_mosaic.version = 11 : i64} {
  func.func @fused_gnn_mean_kernel(%arg0: i32, %arg1: memref<1x256x11xf32, #tpu.memory_space<vmem>>, %arg2: memref<1x1x256xf32, #tpu.memory_space<vmem>>, %arg3: memref<11x32xf32, #tpu.memory_space<vmem>>, %arg4: memref<1x32xf32, #tpu.memory_space<vmem>>, %arg5: memref<32x32xf32, #tpu.memory_space<vmem>>, %arg6: memref<1x32xf32, #tpu.memory_space<vmem>>, %arg7: memref<32x1xf32, #tpu.memory_space<vmem>>, %arg8: memref<1x1xf32, #tpu.memory_space<vmem>>, %arg9: memref<1x16x1xf32, #tpu.memory_space<vmem>>) attributes {dimension_semantics = [#tpu.dimension_semantics<parallel>], iteration_bounds = array<i64: 2>, scalar_prefetch = 0 : i64, scratch_operands = 0 : i64, tpu.core_type = #tpu.core_type<tc>, window_params = [{transform_indices = @transform_0, window_bounds = array<i64: 1, 256, 11>}, {transform_indices = @transform_1, window_bounds = array<i64: 1, 1, 256>}, {pipeline_mode = #tpu.pipeline_mode<synchronous>, transform_indices = @transform_2, window_bounds = array<i64: 11, 32>}, {pipeline_mode = #tpu.pipeline_mode<synchronous>, transform_indices = @transform_3, window_bounds = array<i64: 1, 32>}, {pipeline_mode = #tpu.pipeline_mode<synchronous>, transform_indices = @transform_4, window_bounds = array<i64: 32, 32>}, {pipeline_mode = #tpu.pipeline_mode<synchronous>, transform_indices = @transform_5, window_bounds = array<i64: 1, 32>}, {pipeline_mode = #tpu.pipeline_mode<synchronous>, transform_indices = @transform_6, window_bounds = array<i64: 32, 1>}, {pipeline_mode = #tpu.pipeline_mode<synchronous>, transform_indices = @transform_7, window_bounds = array<i64: 1, 1>}, {transform_indices = @transform_8, window_bounds = array<i64: 1, 16, 1>}]} {
    %c0 = arith.constant 0 : index
    %c0_0 = arith.constant 0 : index
    %c0_1 = arith.constant 0 : index
    %0 = vector.load %arg1[%c0, %c0_0, %c0_1] : memref<1x256x11xf32, #tpu.memory_space<vmem>>, vector<1x256x11xf32>
    %1 = vector.shape_cast %0 : vector<1x256x11xf32> to vector<256x11xf32>
    %c0_2 = arith.constant 0 : index
    %c0_3 = arith.constant 0 : index
    %2 = vector.load %arg3[%c0_2, %c0_3] : memref<11x32xf32, #tpu.memory_space<vmem>>, vector<11x32xf32>
    %cst = arith.constant dense<0.000000e+00> : vector<256x32xf32>
    %3 = tpu.matmul %1, %2, %cst {dimension_numbers = #tpu.dot_dimension_numbers<[1], [0], [0], [1], [0, 0, 1, 1], [], []>} : vector<256x11xf32>, vector<11x32xf32>, vector<256x32xf32> -> vector<256x32xf32>
    %c0_4 = arith.constant 0 : index
    %c0_5 = arith.constant 0 : index
    %4 = vector.load %arg4[%c0_4, %c0_5] : memref<1x32xf32, #tpu.memory_space<vmem>>, vector<1x32xf32>
    %5 = vector.broadcast %4 : vector<1x32xf32> to vector<256x32xf32>
    %6 = arith.addf %3, %5 : vector<256x32xf32>
    %cst_6 = arith.constant 0.000000e+00 : f32
    %7 = vector.broadcast %cst_6 : f32 to vector<256x32xf32>
    %8 = arith.maximumf %6, %7 : vector<256x32xf32>
    %c0_7 = arith.constant 0 : index
    %c0_8 = arith.constant 0 : index
    %9 = vector.load %arg5[%c0_7, %c0_8] : memref<32x32xf32, #tpu.memory_space<vmem>>, vector<32x32xf32>
    %cst_9 = arith.constant dense<0.000000e+00> : vector<256x32xf32>
    %10 = tpu.matmul %8, %9, %cst_9 {dimension_numbers = #tpu.dot_dimension_numbers<[1], [0], [0], [1], [0, 0, 1, 1], [], []>} : vector<256x32xf32>, vector<32x32xf32>, vector<256x32xf32> -> vector<256x32xf32>
    %c0_10 = arith.constant 0 : index
    %c0_11 = arith.constant 0 : index
    %11 = vector.load %arg6[%c0_10, %c0_11] : memref<1x32xf32, #tpu.memory_space<vmem>>, vector<1x32xf32>
    %12 = vector.broadcast %11 : vector<1x32xf32> to vector<256x32xf32>
    %13 = arith.addf %10, %12 : vector<256x32xf32>
    %cst_12 = arith.constant 0.000000e+00 : f32
    %14 = vector.broadcast %cst_12 : f32 to vector<256x32xf32>
    %15 = arith.maximumf %13, %14 : vector<256x32xf32>
    %c0_13 = arith.constant 0 : index
    %c0_14 = arith.constant 0 : index
    %16 = vector.load %arg7[%c0_13, %c0_14] : memref<32x1xf32, #tpu.memory_space<vmem>>, vector<32x1xf32>
    %cst_15 = arith.constant dense<0.000000e+00> : vector<256x1xf32>
    %17 = tpu.matmul %15, %16, %cst_15 {dimension_numbers = #tpu.dot_dimension_numbers<[1], [0], [0], [1], [0, 0, 1, 1], [], []>} : vector<256x32xf32>, vector<32x1xf32>, vector<256x1xf32> -> vector<256x1xf32>
    %c0_16 = arith.constant 0 : index
    %c0_17 = arith.constant 0 : index
    %18 = vector.load %arg8[%c0_16, %c0_17] : memref<1x1xf32, #tpu.memory_space<vmem>>, vector<1x1xf32>
    %19 = vector.broadcast %18 : vector<1x1xf32> to vector<256x1xf32>
    %20 = arith.addf %17, %19 : vector<256x1xf32>
    %c0_18 = arith.constant 0 : index
    %c0_19 = arith.constant 0 : index
    %c0_20 = arith.constant 0 : index
    %21 = vector.load %arg2[%c0_18, %c0_19, %c0_20] : memref<1x1x256xf32, #tpu.memory_space<vmem>>, vector<1x1x256xf32>
    %22 = vector.shape_cast %21 : vector<1x1x256xf32> to vector<1x256xf32>
    %23 = tpu.iota {dimensions = array<i32: 0>} : vector<16x256xi32>
    %24 = tpu.iota {dimensions = array<i32: 1>} : vector<16x256xi32>
    %c16_i32 = arith.constant 16 : i32
    %25 = vector.broadcast %c16_i32 : i32 to vector<16x256xi32>
    %26 = arith.muli %23, %25 : vector<16x256xi32>
    %27 = arith.cmpi sge, %24, %26 : vector<16x256xi32>
    %c1_i32 = arith.constant 1 : i32
    %28 = vector.broadcast %c1_i32 : i32 to vector<16x256xi32>
    %29 = arith.addi %23, %28 : vector<16x256xi32>
    %c16_i32_21 = arith.constant 16 : i32
    %30 = vector.broadcast %c16_i32_21 : i32 to vector<16x256xi32>
    %31 = arith.muli %29, %30 : vector<16x256xi32>
    %32 = arith.cmpi slt, %24, %31 : vector<16x256xi32>
    %33 = arith.andi %27, %32 : vector<16x256xi1>
    %cst_22 = arith.constant 0.000000e+00 : f32
    %34 = vector.shape_cast %22 : vector<1x256xf32> to vector<1x256xf32>
    %35 = vector.broadcast %34 : vector<1x256xf32> to vector<16x256xf32>
    %36 = vector.broadcast %cst_22 : f32 to vector<16x256xf32>
    %37 = arith.select %33, %35, %36 : vector<16x256xi1>, vector<16x256xf32>
    %cst_23 = arith.constant dense<0.000000e+00> : vector<16x1xf32>
    %38 = tpu.matmul %37, %20, %cst_23 {dimension_numbers = #tpu.dot_dimension_numbers<[1], [0], [0], [1], [0, 0, 1, 1], [], []>} : vector<16x256xf32>, vector<256x1xf32>, vector<16x1xf32> -> vector<16x1xf32>
    %cst_24 = arith.constant dense<0.000000e+00> : vector<16xf32>
    %39 = vector.multi_reduction <add>, %37, %cst_24 [1] : vector<16x256xf32> to vector<16xf32>
    %40 = vector.shape_cast %39 : vector<16xf32> to vector<16x1xf32>
    %41 = tpu.reciprocal %40 : vector<16x1xf32> -> vector<16x1xf32>
    %42 = arith.mulf %38, %41 : vector<16x1xf32>
    %c0_25 = arith.constant 0 : index
    %c0_26 = arith.constant 0 : index
    %c0_27 = arith.constant 0 : index
    %43 = vector.load %arg9[%c0_25, %c0_26, %c0_27] : memref<1x16x1xf32, #tpu.memory_space<vmem>>, vector<1x16x1xf32>
    %44 = vector.shape_cast %43 : vector<1x16x1xf32> to vector<16x1xf32>
    %45 = vector.shape_cast %42 : vector<16x1xf32> to vector<1x16x1xf32>
    tpu.vector_store %arg9[%c0_25, %c0_26, %c0_27], %45 {strides = array<i32>} : memref<1x16x1xf32, #tpu.memory_space<vmem>>, vector<1x16x1xf32>,
    return
  }
  func.func @transform_0(%arg0: i32) -> (i32, i32, i32) {
    %c0_i32 = arith.constant 0 : i32
    %c0_i32_0 = arith.constant 0 : i32
    %c0_i32_1 = arith.constant 0 : i32
    return %arg0, %c0_i32, %c0_i32_0 : i32, i32, i32
  }
  func.func @transform_1(%arg0: i32) -> (i32, i32, i32) {
    %c0_i32 = arith.constant 0 : i32
    %c0_i32_0 = arith.constant 0 : i32
    %c0_i32_1 = arith.constant 0 : i32
    return %arg0, %c0_i32, %c0_i32_0 : i32, i32, i32
  }
  func.func @transform_2(%arg0: i32) -> (i32, i32) {
    %c0_i32 = arith.constant 0 : i32
    %c0_i32_0 = arith.constant 0 : i32
    %c0_i32_1 = arith.constant 0 : i32
    return %c0_i32, %c0_i32_0 : i32, i32
  }
  func.func @transform_3(%arg0: i32) -> (i32, i32) {
    %c0_i32 = arith.constant 0 : i32
    %c0_i32_0 = arith.constant 0 : i32
    %c0_i32_1 = arith.constant 0 : i32
    return %c0_i32, %c0_i32_0 : i32, i32
  }
  func.func @transform_4(%arg0: i32) -> (i32, i32) {
    %c0_i32 = arith.constant 0 : i32
    %c0_i32_0 = arith.constant 0 : i32
    %c0_i32_1 = arith.constant 0 : i32
    return %c0_i32, %c0_i32_0 : i32, i32
  }
  func.func @transform_5(%arg0: i32) -> (i32, i32) {
    %c0_i32 = arith.constant 0 : i32
    %c0_i32_0 = arith.constant 0 : i32
    %c0_i32_1 = arith.constant 0 : i32
    return %c0_i32, %c0_i32_0 : i32, i32
  }
  func.func @transform_6(%arg0: i32) -> (i32, i32) {
    %c0_i32 = arith.constant 0 : i32
    %c0_i32_0 = arith.constant 0 : i32
    %c0_i32_1 = arith.constant 0 : i32
    return %c0_i32, %c0_i32_0 : i32, i32
  }
  func.func @transform_7(%arg0: i32) -> (i32, i32) {
    %c0_i32 = arith.constant 0 : i32
    %c0_i32_0 = arith.constant 0 : i32
    %c0_i32_1 = arith.constant 0 : i32
    return %c0_i32, %c0_i32_0 : i32, i32
  }
  func.func @transform_8(%arg0: i32) -> (i32, i32, i32) {
    %c0_i32 = arith.constant 0 : i32
    %c0_i32_0 = arith.constant 0 : i32
    %c0_i32_1 = arith.constant 0 : i32
    return %arg0, %c0_i32, %c0_i32_0 : i32, i32, i32
  }
}

</mosaic_0001>

<llo_original>
// kernel: simple_gnn_layer.1
$region0: #{simple_gnn_layer.1}
  #allocation0 [shape = 'u32[]', space=smem, size = 0x4, offset = 0x4, fixed_abs, tag = 'smem constant byte address 0x4 - core index']
  #allocation1 [shape = 'u32[144,128]{1,0:T(1,128)}', space=vmem, size = 0x12000, scoped, tag = 'internal scratch']
  #allocation2 [shape = 'f32[1,1]{1,0:T(1,128)S(1)}', space=vmem, size = 0x200, scoped, tag = 'scoped memory for simple_gnn_layer.1']
  %s0 = inlined_call_operand.vmem [shape: f32[2,256,11], index: 0, kind: input, shape index: {}]
  %s1 = inlined_call_operand.vmem [shape: f32[2,1,256], index: 1, kind: input, shape index: {}]
  %s2 = inlined_call_operand.vmem [shape: f32[11,32], index: 2, kind: input, shape index: {}]
  %s3 = inlined_call_operand.vmem [shape: f32[1,32], index: 3, kind: input, shape index: {}]
  %s4 = inlined_call_operand.vmem [shape: f32[32,32], index: 4, kind: input, shape index: {}]
  %s5 = inlined_call_operand.vmem [shape: f32[1,32], index: 5, kind: input, shape index: {}]
  %s6 = inlined_call_operand.vmem [shape: f32[32,1], index: 6, kind: input, shape index: {}]
  %s7 = inlined_call_operand.<no memory space> [shape: f32[1,1], index: 7, kind: input, shape index: {}]
  %s8 = inlined_call_operand.vmem [shape: f32[2,16,1], index: 8, kind: output, shape index: {}]
  %s9 = sld [smem:[#allocation0]]
  $region65: #{simple_gnn_layer.1} parent=0
    _
  %s11 = ssub.s32 1, %s9
  %s12 = scalar_select 0, %s11, %s9
  %v13 = vstv %s7
  %14 = vst [vmem:[#allocation2] sm:$0x1] %v13
  loop: start=0, step=1, limit=4
  $region2: #{simple_gnn_layer.1} parent=0 // loop_pre_header
    _
  $region3: #{simple_gnn_layer.1} parent=0 // loop_header
    %s16 = sphi 0, %s20
    %p17 = scmp.ge.s32.totalorder %s16, 4
    %s26 = sphi 0, %s28
    %s29 = sphi 0, %s26
    %s30 = sphi 0, %s29
    %s46 = sphi 0, %s30
    %s52 = sphi 0, %s54
    %s55 = sphi 0, %s52
    %s56 = sphi 0, %s55
    %s72 = sphi 0, %s56
    %s76 = sphi 0, %s76
    %s78 = sphi 0, %s76
    %s79 = sphi 0, %s78
    %s93 = sphi 0, %s79
    %s97 = sphi 0, %s97
    %s99 = sphi 0, %s97
    %s100 = sphi 0, %s99
    %s114 = sphi 0, %s100
    %s118 = sphi 0, %s118
    %s120 = sphi 0, %s118
    %s121 = sphi 0, %s120
    %s135 = sphi 0, %s121
    %s139 = sphi 0, %s139
    %s141 = sphi 0, %s139
    %s142 = sphi 0, %s141
    %s156 = sphi 0, %s142
    %s160 = sphi 0, %s160
    %s162 = sphi 0, %s160
    %s163 = sphi 0, %s162
    %s177 = sphi 0, %s163
    %s181 = sphi 0, %s181
    %s183 = sphi 0, %s181
    %s184 = sphi 0, %s183
    %s198 = sphi 0, %s184
    %s204 = sphi 0, %s206
    %s207 = sphi 0, %s204
    %s208 = sphi 0, %s207
    %s224 = sphi 0, %s208
  $region4: #{simple_gnn_layer.1} parent=0 // loop_header_branch
    %19 = sbr.rel (%p17) target = $region8
  $region5: #{simple_gnn_layer.1} parent=0 // loop_body
    %s21 = ssub.s32 %s16, 1
    %s22 = ssub.s32 %s16, 2
    %s23 = sadd.s32 %s16, 1
    %s24 = ssub.s32 %s16, %s23
    %p25 = scmp.eq.s32.totalorder %s24, 0
    %s27 = sadd.s32 %s26, 1
    %s28 = scalar_select %p25, %s26, %s27
    %p31 = pneg %p25
    %p32 = scmp.eq.s32.totalorder %s16, 1
    %p33 = por %p31, %p32
    %p34 = scmp.ne.s32.totalorder %s26, %s29
    %p35 = scmp.eq.s32.totalorder %s16, 0
    %p36 = por %p34, %p35
    %p37 = scmp.ne.s32.totalorder %s26, %s29
    %p38 = scmp.eq.s32.totalorder %s21, 1
    %p39 = por %p37, %p38
    %p40 = scmp.ne.s32.totalorder %s29, %s30
    %p41 = scmp.eq.s32.totalorder %s21, 0
    %p42 = por %p40, %p41
    %p43 = scmp.ne.s32.totalorder %s29, %s30
    %p44 = scmp.eq.s32.totalorder %s22, 1
    %p45 = por %p43, %p44
    %p47 = scmp.ne.s32.totalorder %s30, %s46
    %p48 = scmp.eq.s32.totalorder %s22, 0
    %p49 = por %p47, %p48
    %s50 = ssub.s32 %s16, %s23
    %p51 = scmp.eq.s32.totalorder %s50, 0
    %s53 = sadd.s32 %s52, 1
    %s54 = scalar_select %p51, %s52, %s53
    %p57 = pneg %p51
    %p58 = scmp.eq.s32.totalorder %s16, 1
    %p59 = por %p57, %p58
    %p60 = scmp.ne.s32.totalorder %s52, %s55
    %p61 = scmp.eq.s32.totalorder %s16, 0
    %p62 = por %p60, %p61
    %p63 = scmp.ne.s32.totalorder %s52, %s55
    %p64 = scmp.eq.s32.totalorder %s21, 1
    %p65 = por %p63, %p64
    %p66 = scmp.ne.s32.totalorder %s55, %s56
    %p67 = scmp.eq.s32.totalorder %s21, 0
    %p68 = por %p66, %p67
    %p69 = scmp.ne.s32.totalorder %s55, %s56
    %p70 = scmp.eq.s32.totalorder %s22, 1
    %p71 = por %p69, %p70
    %p73 = scmp.ne.s32.totalorder %s56, %s72
    %p74 = scmp.eq.s32.totalorder %s22, 0
    %p75 = por %p73, %p74
    %s77 = sadd.s32 %s76, 1
    %p80 = scmp.eq.s32.totalorder %s16, 1
    %p81 = scmp.ne.s32.totalorder %s76, %s78
    %p82 = scmp.eq.s32.totalorder %s16, 0
    %p83 = por %p81, %p82
    %p84 = scmp.ne.s32.totalorder %s76, %s78
    %p85 = scmp.eq.s32.totalorder %s21, 1
    %p86 = por %p84, %p85
    %p87 = scmp.ne.s32.totalorder %s78, %s79
    %p88 = scmp.eq.s32.totalorder %s21, 0
    %p89 = por %p87, %p88
    %p90 = scmp.ne.s32.totalorder %s78, %s79
    %p91 = scmp.eq.s32.totalorder %s22, 1
    %p92 = por %p90, %p91
    %p94 = scmp.ne.s32.totalorder %s79, %s93
    %p95 = scmp.eq.s32.totalorder %s22, 0
    %p96 = por %p94, %p95
    %s98 = sadd.s32 %s97, 1
    %p101 = scmp.eq.s32.totalorder %s16, 1
    %p102 = scmp.ne.s32.totalorder %s97, %s99
    %p103 = scmp.eq.s32.totalorder %s16, 0
    %p104 = por %p102, %p103
    %p105 = scmp.ne.s32.totalorder %s97, %s99
    %p106 = scmp.eq.s32.totalorder %s21, 1
    %p107 = por %p105, %p106
    %p108 = scmp.ne.s32.totalorder %s99, %s100
    %p109 = scmp.eq.s32.totalorder %s21, 0
    %p110 = por %p108, %p109
    %p111 = scmp.ne.s32.totalorder %s99, %s100
    %p112 = scmp.eq.s32.totalorder %s22, 1
    %p113 = por %p111, %p112
    %p115 = scmp.ne.s32.totalorder %s100, %s114
    %p116 = scmp.eq.s32.totalorder %s22, 0
    %p117 = por %p115, %p116
    %s119 = sadd.s32 %s118, 1
    %p122 = scmp.eq.s32.totalorder %s16, 1
    %p123 = scmp.ne.s32.totalorder %s118, %s120
    %p124 = scmp.eq.s32.totalorder %s16, 0
    %p125 = por %p123, %p124
    %p126 = scmp.ne.s32.totalorder %s118, %s120
    %p127 = scmp.eq.s32.totalorder %s21, 1
    %p128 = por %p126, %p127
    %p129 = scmp.ne.s32.totalorder %s120, %s121
    %p130 = scmp.eq.s32.totalorder %s21, 0
    %p131 = por %p129, %p130
    %p132 = scmp.ne.s32.totalorder %s120, %s121
    %p133 = scmp.eq.s32.totalorder %s22, 1
    %p134 = por %p132, %p133
    %p136 = scmp.ne.s32.totalorder %s121, %s135
    %p137 = scmp.eq.s32.totalorder %s22, 0
    %p138 = por %p136, %p137
    %s140 = sadd.s32 %s139, 1
    %p143 = scmp.eq.s32.totalorder %s16, 1
    %p144 = scmp.ne.s32.totalorder %s139, %s141
    %p145 = scmp.eq.s32.totalorder %s16, 0
    %p146 = por %p144, %p145
    %p147 = scmp.ne.s32.totalorder %s139, %s141
    %p148 = scmp.eq.s32.totalorder %s21, 1
    %p149 = por %p147, %p148
    %p150 = scmp.ne.s32.totalorder %s141, %s142
    %p151 = scmp.eq.s32.totalorder %s21, 0
    %p152 = por %p150, %p151
    %p153 = scmp.ne.s32.totalorder %s141, %s142
    %p154 = scmp.eq.s32.totalorder %s22, 1
    %p155 = por %p153, %p154
    %p157 = scmp.ne.s32.totalorder %s142, %s156
    %p158 = scmp.eq.s32.totalorder %s22, 0
    %p159 = por %p157, %p158
    %s161 = sadd.s32 %s160, 1
    %p164 = scmp.eq.s32.totalorder %s16, 1
    %p165 = scmp.ne.s32.totalorder %s160, %s162
    %p166 = scmp.eq.s32.totalorder %s16, 0
    %p167 = por %p165, %p166
    %p168 = scmp.ne.s32.totalorder %s160, %s162
    %p169 = scmp.eq.s32.totalorder %s21, 1
    %p170 = por %p168, %p169
    %p171 = scmp.ne.s32.totalorder %s162, %s163
    %p172 = scmp.eq.s32.totalorder %s21, 0
    %p173 = por %p171, %p172
    %p174 = scmp.ne.s32.totalorder %s162, %s163
    %p175 = scmp.eq.s32.totalorder %s22, 1
    %p176 = por %p174, %p175
    %p178 = scmp.ne.s32.totalorder %s163, %s177
    %p179 = scmp.eq.s32.totalorder %s22, 0
    %p180 = por %p178, %p179
    %s182 = sadd.s32 %s181, 1
    %p185 = scmp.eq.s32.totalorder %s16, 1
    %p186 = scmp.ne.s32.totalorder %s181, %s183
    %p187 = scmp.eq.s32.totalorder %s16, 0
    %p188 = por %p186, %p187
    %p189 = scmp.ne.s32.totalorder %s181, %s183
    %p190 = scmp.eq.s32.totalorder %s21, 1
    %p191 = por %p189, %p190
    %p192 = scmp.ne.s32.totalorder %s183, %s184
    %p193 = scmp.eq.s32.totalorder %s21, 0
    %p194 = por %p192, %p193
    %p195 = scmp.ne.s32.totalorder %s183, %s184
    %p196 = scmp.eq.s32.totalorder %s22, 1
    %p197 = por %p195, %p196
    %p199 = scmp.ne.s32.totalorder %s184, %s198
    %p200 = scmp.eq.s32.totalorder %s22, 0
    %p201 = por %p199, %p200
    %s202 = ssub.s32 %s16, %s23
    %p203 = scmp.eq.s32.totalorder %s202, 0
    %s205 = sadd.s32 %s204, 1
    %s206 = scalar_select %p203, %s204, %s205
    %p209 = pneg %p203
    %p210 = scmp.eq.s32.totalorder %s16, 1
    %p211 = por %p209, %p210
    %p212 = scmp.ne.s32.totalorder %s204, %s207
    %p213 = scmp.eq.s32.totalorder %s16, 0
    %p214 = por %p212, %p213
    %p215 = scmp.ne.s32.totalorder %s204, %s207
    %p216 = scmp.eq.s32.totalorder %s21, 1
    %p217 = por %p215, %p216
    %p218 = scmp.ne.s32.totalorder %s207, %s208
    %p219 = scmp.eq.s32.totalorder %s21, 0
    %p220 = por %p218, %p219
    %p221 = scmp.ne.s32.totalorder %s207, %s208
    %p222 = scmp.eq.s32.totalorder %s22, 1
    %p223 = por %p221, %p222
    %p225 = scmp.ne.s32.totalorder %s208, %s224
    %p226 = scmp.eq.s32.totalorder %s22, 0
    %p227 = por %p225, %p226
    %p228 = scmp.le.s32.totalorder 1, %s16
    %p229 = scmp.lt.s32.totalorder %s16, 3
    %p230 = pnand %p228, %p229
    %p231 = pneg %p230
    // Predicated region
    $region9: #{simple_gnn_layer.1} parent=5 // pred_check
      _
    $region10: #{simple_gnn_layer.1} parent=5 // pred_check_branch
      %233 = sbr.rel (%p230) target = $region12
    $region11: #{simple_gnn_layer.1} parent=5 // pred_region
      %s234 = ssub.s32 %s16, 1
      // Predicated region
      $region13: #{simple_gnn_layer.1} parent=11 // pred_check
        %p235 = pneg %p89
      $region14: #{simple_gnn_layer.1} parent=11 // pred_check_branch
        %237 = sbr.rel (%p235) target = $region16
      $region15: #{simple_gnn_layer.1} parent=11 // pred_region
        _
      $region16: #{simple_gnn_layer.1} parent=11 // pred_fallthru
        _
      // Predicated region
      $region17: #{simple_gnn_layer.1} parent=11 // pred_check
        %p238 = pneg %p110
      $region18: #{simple_gnn_layer.1} parent=11 // pred_check_branch
        %240 = sbr.rel (%p238) target = $region20
      $region19: #{simple_gnn_layer.1} parent=11 // pred_region
        _
      $region20: #{simple_gnn_layer.1} parent=11 // pred_fallthru
        _
      // Predicated region
      $region21: #{simple_gnn_layer.1} parent=11 // pred_check
        %p241 = pneg %p131
      $region22: #{simple_gnn_layer.1} parent=11 // pred_check_branch
        %243 = sbr.rel (%p241) target = $region24
      $region23: #{simple_gnn_layer.1} parent=11 // pred_region
        _
      $region24: #{simple_gnn_layer.1} parent=11 // pred_fallthru
        _
      // Predicated region
      $region25: #{simple_gnn_layer.1} parent=11 // pred_check
        %p244 = pneg %p152
      $region26: #{simple_gnn_layer.1} parent=11 // pred_check_branch
        %246 = sbr.rel (%p244) target = $region28
      $region27: #{simple_gnn_layer.1} parent=11 // pred_region
        _
      $region28: #{simple_gnn_layer.1} parent=11 // pred_fallthru
        _
      // Predicated region
      $region29: #{simple_gnn_layer.1} parent=11 // pred_check
        %p247 = pneg %p173
      $region30: #{simple_gnn_layer.1} parent=11 // pred_check_branch
        %249 = sbr.rel (%p247) target = $region32
      $region31: #{simple_gnn_layer.1} parent=11 // pred_region
        _
      $region32: #{simple_gnn_layer.1} parent=11 // pred_fallthru
        _
      // Predicated region
      $region33: #{simple_gnn_layer.1} parent=11 // pred_check
        %p250 = pneg %p194
      $region34: #{simple_gnn_layer.1} parent=11 // pred_check_branch
        %252 = sbr.rel (%p250) target = $region36
      $region35: #{simple_gnn_layer.1} parent=11 // pred_region
        _
      $region36: #{simple_gnn_layer.1} parent=11 // pred_fallthru
        _
    $region12: #{simple_gnn_layer.1} parent=5 // pred_fallthru
      _
    %p253 = scmp.lt.s32.totalorder %s16, 2
    // Predicated region
    $region37: #{simple_gnn_layer.1} parent=5 // pred_check
      %p254 = pneg %p253
    $region38: #{simple_gnn_layer.1} parent=5 // pred_check_branch
      %256 = sbr.rel (%p254) target = $region40
    $region39: #{simple_gnn_layer.1} parent=5 // pred_region
      // Predicated region
      $region41: #{simple_gnn_layer.1} parent=39 // pred_check
        %p257 = pneg %p36
      $region42: #{simple_gnn_layer.1} parent=39 // pred_check_branch
        %259 = sbr.rel (%p257) target = $region44
      $region43: #{simple_gnn_layer.1} parent=39 // pred_region
        %p260 = scmp.lt.s32.totalorder %s16, 1
        %s261 = scalar_select %p260, %s16, 1
        %s262 = smul.addr %s261, 32
        %s263 = smul.addr %s262, 8
        %s264 = scalar_lea.vmem %s0, %s263
      $region44: #{simple_gnn_layer.1} parent=39 // pred_fallthru
        _
      // Predicated region
      $region45: #{simple_gnn_layer.1} parent=39 // pred_check
        %p265 = pneg %p62
      $region46: #{simple_gnn_layer.1} parent=39 // pred_check_branch
        %267 = sbr.rel (%p265) target = $region48
      $region47: #{simple_gnn_layer.1} parent=39 // pred_region
        %p268 = scmp.lt.s32.totalorder %s16, 1
        %s269 = scalar_select %p268, %s16, 1
        %s270 = smul.addr %s269, 2
        %s271 = scalar_lea.vmem %s1, %s270
      $region48: #{simple_gnn_layer.1} parent=39 // pred_fallthru
        _
    $region40: #{simple_gnn_layer.1} parent=5 // pred_fallthru
      _
    %p272 = scmp.le.s32.totalorder 1, %s16
    %p273 = scmp.lt.s32.totalorder %s16, 3
    %p274 = pnand %p272, %p273
    %p275 = pneg %p274
    // Predicated region
    $region49: #{simple_gnn_layer.1} parent=5 // pred_check
      _
    $region50: #{simple_gnn_layer.1} parent=5 // pred_check_branch
      %277 = sbr.rel (%p274) target = $region52
    $region51: #{simple_gnn_layer.1} parent=5 // pred_region
      %s278 = ssub.s32 %s16, 1
      %p279 = scmp.lt.s32.totalorder %s21, 1
      %s280 = scalar_select %p279, %s21, 1
      %s281 = smul.addr %s280, 32
      %s282 = smul.addr %s281, 8
      %s283 = scalar_lea.vmem %s0, %s282
      %p284 = pneg %p42
      %p285 = pneg %p39
      %p286 = scmp.lt.s32.totalorder %s21, 1
      %s287 = scalar_select %p286, %s21, 1
      %s288 = smul.addr %s287, 2
      %s289 = scalar_lea.vmem %s1, %s288
      %p290 = pneg %p68
      %p291 = pneg %p65
      %p292 = pneg %p89
      %p293 = pneg %p86
      %p294 = pneg %p110
      %p295 = pneg %p107
      %p296 = pneg %p131
      %p297 = pneg %p128
      %p298 = pneg %p152
      %p299 = pneg %p149
      %p300 = pneg %p173
      %p301 = pneg %p170
      %p302 = pneg %p194
      %p303 = pneg %p191
      %p304 = pneg %p220
      %p305 = pneg %p217
      %p306 = scmp.lt.s32.totalorder %s21, 1
      %s307 = scalar_select %p306, %s21, 1
      %s308 = smul.addr %s307, 2
      %s309 = smul.addr %s308, 8
      %s310 = scalar_lea.vmem %s8, %s309
      %p311 = scmp.lt.s32.totalorder %s21, 1
      %s312 = scalar_select %p311, %s21, 1
      %s313 = smul.addr %s312, 32
      %s314 = smul.addr %s313, 8
      %s315 = scalar_lea.vmem %s0, %s314
      %p316 = scmp.lt.s32.totalorder %s21, 1
      %s317 = scalar_select %p316, %s21, 1
      %s318 = smul.addr %s317, 2
      %s319 = scalar_lea.vmem %s1, %s318
      %p320 = scmp.lt.s32.totalorder %s21, 1
      %s321 = scalar_select %p320, %s21, 1
      %s322 = smul.addr %s321, 2
      %s323 = smul.addr %s322, 8
      %s324 = scalar_lea.vmem %s8, %s323
      %v325 = vld [vmem:[%s315] sm:$0xff]
      %v326 = vld [vmem:[%s315 + $0x8] sm:$0xff]
      %v327 = vld [vmem:[%s315 + $0x10] sm:$0xff]
      %v328 = vld [vmem:[%s315 + $0x18] sm:$0xff]
      %v329 = vld [vmem:[%s315 + $0x20] sm:$0xff]
      %v330 = vld [vmem:[%s315 + $0x28] sm:$0xff]
      %v331 = vld [vmem:[%s315 + $0x30] sm:$0xff]
      %v332 = vld [vmem:[%s315 + $0x38] sm:$0xff]
      %v333 = vld [vmem:[%s315 + $0x40] sm:$0xff]
      %v334 = vld [vmem:[%s315 + $0x48] sm:$0xff]
      %v335 = vld [vmem:[%s315 + $0x50] sm:$0xff]
      %v336 = vld [vmem:[%s315 + $0x58] sm:$0xff]
      %v337 = vld [vmem:[%s315 + $0x60] sm:$0xff]
      %v338 = vld [vmem:[%s315 + $0x68] sm:$0xff]
      %v339 = vld [vmem:[%s315 + $0x70] sm:$0xff]
      %v340 = vld [vmem:[%s315 + $0x78] sm:$0xff]
      %v341 = vld [vmem:[%s315 + $0x80] sm:$0xff]
      %v342 = vld [vmem:[%s315 + $0x88] sm:$0xff]
      %v343 = vld [vmem:[%s315 + $0x90] sm:$0xff]
      %v344 = vld [vmem:[%s315 + $0x98] sm:$0xff]
      %v345 = vld [vmem:[%s315 + $0xa0] sm:$0xff]
      %v346 = vld [vmem:[%s315 + $0xa8] sm:$0xff]
      %v347 = vld [vmem:[%s315 + $0xb0] sm:$0xff]
      %v348 = vld [vmem:[%s315 + $0xb8] sm:$0xff]
      %v349 = vld [vmem:[%s315 + $0xc0] sm:$0xff]
      %v350 = vld [vmem:[%s315 + $0xc8] sm:$0xff]
      %v351 = vld [vmem:[%s315 + $0xd0] sm:$0xff]
      %v352 = vld [vmem:[%s315 + $0xd8] sm:$0xff]
      %v353 = vld [vmem:[%s315 + $0xe0] sm:$0xff]
      %v354 = vld [vmem:[%s315 + $0xe8] sm:$0xff]
      %v355 = vld [vmem:[%s315 + $0xf0] sm:$0xff]
      %v356 = vld [vmem:[%s315 + $0xf8] sm:$0xff]
      %v357 = vld [vmem:[%s2] sm:$0xff]
      %v358 = vld [vmem:[%s2 + $0x8] sm:$0x7]
      %v359 = vld [vmem:[%s3] sm:$0x1]
      %v361 = vlaneseq
      %v362 = vshrl.u32 %v361, 7
      %v363 = vsub.s32 0, %v362
      %v364 = vrot.slane %v359, %v363
      %vm366 = vcmask 89088
      %v368 = vsel %vm366, %v325, 0
      %v371 = vsel %vm366, %v326, 0
      %v374 = vsel %vm366, %v327, 0
      %v377 = vsel %vm366, %v328, 0
      %v380 = vsel %vm366, %v329, 0
      %v383 = vsel %vm366, %v330, 0
      %v386 = vsel %vm366, %v331, 0
      %v389 = vsel %vm366, %v332, 0
      %v392 = vsel %vm366, %v333, 0
      %v395 = vsel %vm366, %v334, 0
      %v398 = vsel %vm366, %v335, 0
      %v401 = vsel %vm366, %v336, 0
      %v404 = vsel %vm366, %v337, 0
      %v407 = vsel %vm366, %v338, 0
      %v410 = vsel %vm366, %v339, 0
      %v413 = vsel %vm366, %v340, 0
      %v416 = vsel %vm366, %v341, 0
      %v419 = vsel %vm366, %v342, 0
      %v422 = vsel %vm366, %v343, 0
      %v425 = vsel %vm366, %v344, 0
      %v428 = vsel %vm366, %v345, 0
      %v431 = vsel %vm366, %v346, 0
      %v434 = vsel %vm366, %v347, 0
      %v437 = vsel %vm366, %v348, 0
      %v440 = vsel %vm366, %v349, 0
      %v443 = vsel %vm366, %v350, 0
      %v446 = vsel %vm366, %v351, 0
      %v449 = vsel %vm366, %v352, 0
      %v452 = vsel %vm366, %v353, 0
      %v455 = vsel %vm366, %v354, 0
      %v458 = vsel %vm366, %v355, 0
      %v461 = vsel %vm366, %v356, 0
      %vm463 = vcmask 1042432
      %v465 = vsel %vm463, %v358, 0
      %467 = vmatprep.subr.mxu0 0.0
      %468 = vmatpush1.msra.mxu0 %v357
      %469 = vmatprep.subr.mxu0 0.0
      %470 = vmatpush1.msra.mxu0 %v465
      %471 = vmatprep.subr.mxu0 0.0
      %472 = vmatpush1.msra.mxu0 0.0
      %473 = vmatprep.subr.mxu0 0.0
      %474 = vmatpush1.msra.mxu0 0.0
      %475 = vmatprep.subr.mxu0 0.0
      %476 = vmatpush1.msra.mxu0 0.0
      %477 = vmatprep.subr.mxu0 0.0
      %478 = vmatpush1.msra.mxu0 0.0
      %479 = vmatprep.subr.mxu0 0.0
      %480 = vmatpush1.msra.mxu0 0.0
      %481 = vmatprep.subr.mxu0 0.0
      %482 = vmatpush1.msra.mxu0 0.0
      %483 = vmatprep.subr.mxu0 0.0
      %484 = vmatpush1.msra.mxu0 0.0
      %485 = vmatprep.subr.mxu0 0.0
      %486 = vmatpush1.msra.mxu0 0.0
      %487 = vmatprep.subr.mxu0 0.0
      %488 = vmatpush1.msra.mxu0 0.0
      %489 = vmatprep.subr.mxu0 0.0
      %490 = vmatpush1.msra.mxu0 0.0
      %491 = vmatprep.subr.mxu0 0.0
      %492 = vmatpush1.msra.mxu0 0.0
      %493 = vmatprep.subr.mxu0 0.0
      %494 = vmatpush1.msra.mxu0 0.0
      %495 = vmatprep.subr.mxu0 0.0
      %496 = vmatpush1.msra.mxu0 0.0
      %497 = vmatprep.subr.mxu0 0.0
      %498 = vmatpush1.msra.mxu0 0.0
      %499 = vmatprep.subr.mxu0 0.0
      %500 = vmatpush1.msra.mxu0 0.0
      %501 = vmatprep.subr.mxu0 0.0
      %502 = vmatpush1.msra.mxu0 0.0
      %503 = vmatprep.subr.mxu0 0.0
      %504 = vmatpush1.msra.mxu0 0.0
      %505 = vmatprep.subr.mxu0 0.0
      %506 = vmatpush1.msra.mxu0 0.0
      %507 = vmatprep.subr.mxu0 0.0
      %508 = vmatpush1.msra.mxu0 0.0
      %509 = vmatprep.subr.mxu0 0.0
      %510 = vmatpush1.msra.mxu0 0.0
      %511 = vmatprep.subr.mxu0 0.0
      %512 = vmatpush1.msra.mxu0 0.0
      %513 = vmatprep.subr.mxu0 0.0
      %514 = vmatpush1.msra.mxu0 0.0
      %515 = vmatprep.subr.mxu0 0.0
      %516 = vmatpush1.msra.mxu0 0.0
      %517 = vmatprep.subr.mxu0 0.0
      %518 = vmatpush1.msra.mxu0 0.0
      %519 = vmatprep.subr.mxu0 0.0
      %520 = vmatpush1.msra.mxu0 0.0
      %521 = vmatprep.subr.mxu0 0.0
      %522 = vmatpush1.msra.mxu0 0.0
      %523 = vmatprep.subr.mxu0 0.0
      %524 = vmatpush1.msra.mxu0 0.0
      %525 = vmatprep.subr.mxu0 0.0
      %526 = vmatpush1.msra.mxu0 0.0
      %527 = vmatprep.subr.mxu0 0.0
      %528 = vmatpush1.msra.mxu0 0.0
      %529 = vmatprep.subr.mxu0 0.0
      %530 = vmatpush1.msra.mxu0 0.0
      %531 = vmatprep.mubr.f32.mxu0 0.0
      %532 = vmatmul.mubr.f32.gmra.mrb[0].mxu0 %v368
      %v533 = vpop.f32.mrb[0].mxu0
      %v534 = vadd.f32 %v364, %v533
      %v535 = vpop.f32.mrb[0].mxu0
      %536 = vmatprep.mubr.f32.mxu0 0.0
      %537 = vmatmul.mubr.f32.gmra.mrb[0].mxu0 %v371
      %v538 = vpop.f32.mrb[0].mxu0
      %v539 = vadd.f32 %v364, %v538
      %v540 = vpop.f32.mrb[0].mxu0
      %541 = vmatprep.mubr.f32.mxu0 0.0
      %542 = vmatmul.mubr.f32.gmra.mrb[0].mxu0 %v374
      %v543 = vpop.f32.mrb[0].mxu0
      %v544 = vadd.f32 %v364, %v543
      %v545 = vpop.f32.mrb[0].mxu0
      %546 = vmatprep.mubr.f32.mxu0 0.0
      %547 = vmatmul.mubr.f32.gmra.mrb[0].mxu0 %v377
      %v548 = vpop.f32.mrb[0].mxu0
      %v549 = vadd.f32 %v364, %v548
      %v550 = vpop.f32.mrb[0].mxu0
      %551 = vmatprep.mubr.f32.mxu0 0.0
      %552 = vmatmul.mubr.f32.gmra.mrb[0].mxu0 %v380
      %v553 = vpop.f32.mrb[0].mxu0
      %v554 = vadd.f32 %v364, %v553
      %v555 = vpop.f32.mrb[0].mxu0
      %556 = vmatprep.mubr.f32.mxu0 0.0
      %557 = vmatmul.mubr.f32.gmra.mrb[0].mxu0 %v383
      %v558 = vpop.f32.mrb[0].mxu0
      %v559 = vadd.f32 %v364, %v558
      %v560 = vpop.f32.mrb[0].mxu0
      %561 = vmatprep.mubr.f32.mxu0 0.0
      %562 = vmatmul.mubr.f32.gmra.mrb[0].mxu0 %v386
      %v563 = vpop.f32.mrb[0].mxu0
      %v564 = vadd.f32 %v364, %v563
      %v565 = vpop.f32.mrb[0].mxu0
      %566 = vmatprep.mubr.f32.mxu0 0.0
      %567 = vmatmul.mubr.f32.gmra.mrb[0].mxu0 %v389
      %v568 = vpop.f32.mrb[0].mxu0
      %v569 = vadd.f32 %v364, %v568
      %v570 = vpop.f32.mrb[0].mxu0
      %571 = vmatprep.mubr.f32.mxu0 0.0
      %572 = vmatmul.mubr.f32.gmra.mrb[0].mxu0 %v392
      %v573 = vpop.f32.mrb[0].mxu0
      %v574 = vadd.f32 %v364, %v573
      %v575 = vpop.f32.mrb[0].mxu0
      %576 = vmatprep.mubr.f32.mxu0 0.0
      %577 = vmatmul.mubr.f32.gmra.mrb[0].mxu0 %v395
      %v578 = vpop.f32.mrb[0].mxu0
      %v579 = vadd.f32 %v364, %v578
      %v580 = vpop.f32.mrb[0].mxu0
      %581 = vmatprep.mubr.f32.mxu0 0.0
      %582 = vmatmul.mubr.f32.gmra.mrb[0].mxu0 %v398
      %v583 = vpop.f32.mrb[0].mxu0
      %v584 = vadd.f32 %v364, %v583
      %v585 = vpop.f32.mrb[0].mxu0
      %586 = vmatprep.mubr.f32.mxu0 0.0
      %587 = vmatmul.mubr.f32.gmra.mrb[0].mxu0 %v401
      %v588 = vpop.f32.mrb[0].mxu0
      %v589 = vadd.f32 %v364, %v588
      %v590 = vpop.f32.mrb[0].mxu0
      %591 = vmatprep.mubr.f32.mxu0 0.0
      %592 = vmatmul.mubr.f32.gmra.mrb[0].mxu0 %v404
      %v593 = vpop.f32.mrb[0].mxu0
      %v594 = vadd.f32 %v364, %v593
      %v595 = vpop.f32.mrb[0].mxu0
      %596 = vmatprep.mubr.f32.mxu0 0.0
      %597 = vmatmul.mubr.f32.gmra.mrb[0].mxu0 %v407
      %v598 = vpop.f32.mrb[0].mxu0
      %v599 = vadd.f32 %v364, %v598
      %v600 = vpop.f32.mrb[0].mxu0
      %601 = vmatprep.mubr.f32.mxu0 0.0
      %602 = vmatmul.mubr.f32.gmra.mrb[0].mxu0 %v410
      %v603 = vpop.f32.mrb[0].mxu0
      %v604 = vadd.f32 %v364, %v603
      %v605 = vpop.f32.mrb[0].mxu0
      %606 = vmatprep.mubr.f32.mxu0 0.0
      %607 = vmatmul.mubr.f32.gmra.mrb[0].mxu0 %v413
      %v608 = vpop.f32.mrb[0].mxu0
      %v609 = vadd.f32 %v364, %v608
      %v610 = vpop.f32.mrb[0].mxu0
      %611 = vmatprep.mubr.f32.mxu0 0.0
      %612 = vmatmul.mubr.f32.gmra.mrb[0].mxu0 %v416
      %v613 = vpop.f32.mrb[0].mxu0
      %v614 = vadd.f32 %v364, %v613
      %v615 = vpop.f32.mrb[0].mxu0
      %616 = vmatprep.mubr.f32.mxu0 0.0
      %617 = vmatmul.mubr.f32.gmra.mrb[0].mxu0 %v419
      %v618 = vpop.f32.mrb[0].mxu0
      %v619 = vadd.f32 %v364, %v618
      %v620 = vpop.f32.mrb[0].mxu0
      %621 = vmatprep.mubr.f32.mxu0 0.0
      %622 = vmatmul.mubr.f32.gmra.mrb[0].mxu0 %v422
      %v623 = vpop.f32.mrb[0].mxu0
      %v624 = vadd.f32 %v364, %v623
      %v625 = vpop.f32.mrb[0].mxu0
      %626 = vmatprep.mubr.f32.mxu0 0.0
      %627 = vmatmul.mubr.f32.gmra.mrb[0].mxu0 %v425
      %v628 = vpop.f32.mrb[0].mxu0
      %v629 = vadd.f32 %v364, %v628
      %v630 = vpop.f32.mrb[0].mxu0
      %631 = vmatprep.mubr.f32.mxu0 0.0
      %632 = vmatmul.mubr.f32.gmra.mrb[0].mxu0 %v428
      %v633 = vpop.f32.mrb[0].mxu0
      %v634 = vadd.f32 %v364, %v633
      %v635 = vpop.f32.mrb[0].mxu0
      %636 = vmatprep.mubr.f32.mxu0 0.0
      %637 = vmatmul.mubr.f32.gmra.mrb[0].mxu0 %v431
      %v638 = vpop.f32.mrb[0].mxu0
      %v639 = vadd.f32 %v364, %v638
      %v640 = vpop.f32.mrb[0].mxu0
      %641 = vmatprep.mubr.f32.mxu0 0.0
      %642 = vmatmul.mubr.f32.gmra.mrb[0].mxu0 %v434
      %v643 = vpop.f32.mrb[0].mxu0
      %v644 = vadd.f32 %v364, %v643
      %v645 = vpop.f32.mrb[0].mxu0
      %646 = vmatprep.mubr.f32.mxu0 0.0
      %647 = vmatmul.mubr.f32.gmra.mrb[0].mxu0 %v437
      %v648 = vpop.f32.mrb[0].mxu0
      %v649 = vadd.f32 %v364, %v648
      %v650 = vpop.f32.mrb[0].mxu0
      %651 = vmatprep.mubr.f32.mxu0 0.0
      %652 = vmatmul.mubr.f32.gmra.mrb[0].mxu0 %v440
      %v653 = vpop.f32.mrb[0].mxu0
      %v654 = vadd.f32 %v364, %v653
      %v655 = vpop.f32.mrb[0].mxu0
      %656 = vmatprep.mubr.f32.mxu0 0.0
      %657 = vmatmul.mubr.f32.gmra.mrb[0].mxu0 %v443
      %v658 = vpop.f32.mrb[0].mxu0
      %v659 = vadd.f32 %v364, %v658
      %v660 = vpop.f32.mrb[0].mxu0
      %661 = vmatprep.mubr.f32.mxu0 0.0
      %662 = vmatmul.mubr.f32.gmra.mrb[0].mxu0 %v446
      %v663 = vpop.f32.mrb[0].mxu0
      %v664 = vadd.f32 %v364, %v663
      %v665 = vpop.f32.mrb[0].mxu0
      %666 = vmatprep.mubr.f32.mxu0 0.0
      %667 = vmatmul.mubr.f32.gmra.mrb[0].mxu0 %v449
      %v668 = vpop.f32.mrb[0].mxu0
      %v669 = vadd.f32 %v364, %v668
      %v670 = vpop.f32.mrb[0].mxu0
      %671 = vmatprep.mubr.f32.mxu0 0.0
      %672 = vmatmul.mubr.f32.gmra.mrb[0].mxu0 %v452
      %v673 = vpop.f32.mrb[0].mxu0
      %v674 = vadd.f32 %v364, %v673
      %v675 = vpop.f32.mrb[0].mxu0
      %676 = vmatprep.mubr.f32.mxu0 0.0
      %677 = vmatmul.mubr.f32.gmra.mrb[0].mxu0 %v455
      %v678 = vpop.f32.mrb[0].mxu0
      %v679 = vadd.f32 %v364, %v678
      %v680 = vpop.f32.mrb[0].mxu0
      %681 = vmatprep.mubr.f32.mxu0 0.0
      %682 = vmatmul.mubr.f32.gmra.mrb[0].mxu0 %v458
      %v683 = vpop.f32.mrb[0].mxu0
      %v684 = vadd.f32 %v364, %v683
      %v685 = vpop.f32.mrb[0].mxu0
      %686 = vmatprep.mubr.f32.mxu0 0.0
      %687 = vmatmul.mubr.f32.gmra.mrb[0].mxu0 %v461
      %v688 = vpop.f32.mrb[0].mxu0
      %v689 = vadd.f32 %v364, %v688
      %v690 = vpop.f32.mrb[0].mxu0
      %691 = vdwg.mxu0
      %v692 = vmax.f32 %v534, 0.0
      %v693 = vmax.f32 %v539, 0.0
      %v694 = vmax.f32 %v544, 0.0
      %v695 = vmax.f32 %v549, 0.0
      %v696 = vmax.f32 %v554, 0.0
      %v697 = vmax.f32 %v559, 0.0
      %v698 = vmax.f32 %v564, 0.0
      %v699 = vmax.f32 %v569, 0.0
      %v700 = vmax.f32 %v574, 0.0
      %v701 = vmax.f32 %v579, 0.0
      %v702 = vmax.f32 %v584, 0.0
      %v703 = vmax.f32 %v589, 0.0
      %v704 = vmax.f32 %v594, 0.0
      %v705 = vmax.f32 %v599, 0.0
      %v706 = vmax.f32 %v604, 0.0
      %v707 = vmax.f32 %v609, 0.0
      %v708 = vmax.f32 %v614, 0.0
      %v709 = vmax.f32 %v619, 0.0
      %v710 = vmax.f32 %v624, 0.0
      %v711 = vmax.f32 %v629, 0.0
      %v712 = vmax.f32 %v634, 0.0
      %v713 = vmax.f32 %v639, 0.0
      %v714 = vmax.f32 %v644, 0.0
      %v715 = vmax.f32 %v649, 0.0
      %v716 = vmax.f32 %v654, 0.0
      %v717 = vmax.f32 %v659, 0.0
      %v718 = vmax.f32 %v664, 0.0
      %v719 = vmax.f32 %v669, 0.0
      %v720 = vmax.f32 %v674, 0.0
      %v721 = vmax.f32 %v679, 0.0
      %v722 = vmax.f32 %v684, 0.0
      %v723 = vmax.f32 %v689, 0.0
      %v724 = vld [vmem:[%s4] sm:$0xff]
      %v725 = vld [vmem:[%s4 + $0x8] sm:$0xff]
      %v726 = vld [vmem:[%s4 + $0x10] sm:$0xff]
      %v727 = vld [vmem:[%s4 + $0x18] sm:$0xff]
      %v728 = vld [vmem:[%s5] sm:$0x1]
      %v730 = vlaneseq
      %v731 = vshrl.u32 %v730, 7
      %v732 = vsub.s32 0, %v731
      %v733 = vrot.slane %v728, %v732
      %vm735 = vcmask 261120
      %v737 = vsel %vm735, %v692, 0
      %v740 = vsel %vm735, %v693, 0
      %v743 = vsel %vm735, %v694, 0
      %v746 = vsel %vm735, %v695, 0
      %v749 = vsel %vm735, %v696, 0
      %v752 = vsel %vm735, %v697, 0
      %v755 = vsel %vm735, %v698, 0
      %v758 = vsel %vm735, %v699, 0
      %v761 = vsel %vm735, %v700, 0
      %v764 = vsel %vm735, %v701, 0
      %v767 = vsel %vm735, %v702, 0
      %v770 = vsel %vm735, %v703, 0
      %v773 = vsel %vm735, %v704, 0
      %v776 = vsel %vm735, %v705, 0
      %v779 = vsel %vm735, %v706, 0
      %v782 = vsel %vm735, %v707, 0
      %v785 = vsel %vm735, %v708, 0
      %v788 = vsel %vm735, %v709, 0
      %v791 = vsel %vm735, %v710, 0
      %v794 = vsel %vm735, %v711, 0
      %v797 = vsel %vm735, %v712, 0
      %v800 = vsel %vm735, %v713, 0
      %v803 = vsel %vm735, %v714, 0
      %v806 = vsel %vm735, %v715, 0
      %v809 = vsel %vm735, %v716, 0
      %v812 = vsel %vm735, %v717, 0
      %v815 = vsel %vm735, %v718, 0
      %v818 = vsel %vm735, %v719, 0
      %v821 = vsel %vm735, %v720, 0
      %v824 = vsel %vm735, %v721, 0
      %v827 = vsel %vm735, %v722, 0
      %v830 = vsel %vm735, %v723, 0
      %832 = vmatprep.subr.mxu0 0.0
      %833 = vmatpush1.msra.mxu0 %v724
      %834 = vmatprep.subr.mxu0 0.0
      %835 = vmatpush1.msra.mxu0 %v725
      %836 = vmatprep.subr.mxu0 0.0
      %837 = vmatpush1.msra.mxu0 %v726
      %838 = vmatprep.subr.mxu0 0.0
      %839 = vmatpush1.msra.mxu0 %v727
      %840 = vmatprep.subr.mxu0 0.0
      %841 = vmatpush1.msra.mxu0 0.0
      %842 = vmatprep.subr.mxu0 0.0
      %843 = vmatpush1.msra.mxu0 0.0
      %844 = vmatprep.subr.mxu0 0.0
      %845 = vmatpush1.msra.mxu0 0.0
      %846 = vmatprep.subr.mxu0 0.0
      %847 = vmatpush1.msra.mxu0 0.0
      %848 = vmatprep.subr.mxu0 0.0
      %849 = vmatpush1.msra.mxu0 0.0
      %850 = vmatprep.subr.mxu0 0.0
      %851 = vmatpush1.msra.mxu0 0.0
      %852 = vmatprep.subr.mxu0 0.0
      %853 = vmatpush1.msra.mxu0 0.0
      %854 = vmatprep.subr.mxu0 0.0
      %855 = vmatpush1.msra.mxu0 0.0
      %856 = vmatprep.subr.mxu0 0.0
      %857 = vmatpush1.msra.mxu0 0.0
      %858 = vmatprep.subr.mxu0 0.0
      %859 = vmatpush1.msra.mxu0 0.0
      %860 = vmatprep.subr.mxu0 0.0
      %861 = vmatpush1.msra.mxu0 0.0
      %862 = vmatprep.subr.mxu0 0.0
      %863 = vmatpush1.msra.mxu0 0.0
      %864 = vmatprep.subr.mxu0 0.0
      %865 = vmatpush1.msra.mxu0 0.0
      %866 = vmatprep.subr.mxu0 0.0
      %867 = vmatpush1.msra.mxu0 0.0
      %868 = vmatprep.subr.mxu0 0.0
      %869 = vmatpush1.msra.mxu0 0.0
      %870 = vmatprep.subr.mxu0 0.0
      %871 = vmatpush1.msra.mxu0 0.0
      %872 = vmatprep.subr.mxu0 0.0
      %873 = vmatpush1.msra.mxu0 0.0
      %874 = vmatprep.subr.mxu0 0.0
      %875 = vmatpush1.msra.mxu0 0.0
      %876 = vmatprep.subr.mxu0 0.0
      %877 = vmatpush1.msra.mxu0 0.0
      %878 = vmatprep.subr.mxu0 0.0
      %879 = vmatpush1.msra.mxu0 0.0
      %880 = vmatprep.subr.mxu0 0.0
      %881 = vmatpush1.msra.mxu0 0.0
      %882 = vmatprep.subr.mxu0 0.0
      %883 = vmatpush1.msra.mxu0 0.0
      %884 = vmatprep.subr.mxu0 0.0
      %885 = vmatpush1.msra.mxu0 0.0
      %886 = vmatprep.subr.mxu0 0.0
      %887 = vmatpush1.msra.mxu0 0.0
      %888 = vmatprep.subr.mxu0 0.0
      %889 = vmatpush1.msra.mxu0 0.0
      %890 = vmatprep.subr.mxu0 0.0
      %891 = vmatpush1.msra.mxu0 0.0
      %892 = vmatprep.subr.mxu0 0.0
      %893 = vmatpush1.msra.mxu0 0.0
      %894 = vmatprep.subr.mxu0 0.0
      %895 = vmatpush1.msra.mxu0 0.0
      %896 = vmatprep.mubr.f32.mxu0 0.0
      %897 = vmatmul.mubr.f32.gmra.mrb[0].mxu0 %v737
      %v898 = vpop.f32.mrb[0].mxu0
      %v899 = vadd.f32 %v733, %v898
      %v900 = vpop.f32.mrb[0].mxu0
      %901 = vmatprep.mubr.f32.mxu0 0.0
      %902 = vmatmul.mubr.f32.gmra.mrb[0].mxu0 %v740
      %v903 = vpop.f32.mrb[0].mxu0
      %v904 = vadd.f32 %v733, %v903
      %v905 = vpop.f32.mrb[0].mxu0
      %906 = vmatprep.mubr.f32.mxu0 0.0
      %907 = vmatmul.mubr.f32.gmra.mrb[0].mxu0 %v743
      %v908 = vpop.f32.mrb[0].mxu0
      %v909 = vadd.f32 %v733, %v908
      %v910 = vpop.f32.mrb[0].mxu0
      %911 = vmatprep.mubr.f32.mxu0 0.0
      %912 = vmatmul.mubr.f32.gmra.mrb[0].mxu0 %v746
      %v913 = vpop.f32.mrb[0].mxu0
      %v914 = vadd.f32 %v733, %v913
      %v915 = vpop.f32.mrb[0].mxu0
      %916 = vmatprep.mubr.f32.mxu0 0.0
      %917 = vmatmul.mubr.f32.gmra.mrb[0].mxu0 %v749
      %v918 = vpop.f32.mrb[0].mxu0
      %v919 = vadd.f32 %v733, %v918
      %v920 = vpop.f32.mrb[0].mxu0
      %921 = vmatprep.mubr.f32.mxu0 0.0
      %922 = vmatmul.mubr.f32.gmra.mrb[0].mxu0 %v752
      %v923 = vpop.f32.mrb[0].mxu0
      %v924 = vadd.f32 %v733, %v923
      %v925 = vpop.f32.mrb[0].mxu0
      %926 = vmatprep.mubr.f32.mxu0 0.0
      %927 = vmatmul.mubr.f32.gmra.mrb[0].mxu0 %v755
      %v928 = vpop.f32.mrb[0].mxu0
      %v929 = vadd.f32 %v733, %v928
      %v930 = vpop.f32.mrb[0].mxu0
      %931 = vmatprep.mubr.f32.mxu0 0.0
      %932 = vmatmul.mubr.f32.gmra.mrb[0].mxu0 %v758
      %v933 = vpop.f32.mrb[0].mxu0
      %v934 = vadd.f32 %v733, %v933
      %v935 = vpop.f32.mrb[0].mxu0
      %936 = vmatprep.mubr.f32.mxu0 0.0
      %937 = vmatmul.mubr.f32.gmra.mrb[0].mxu0 %v761
      %v938 = vpop.f32.mrb[0].mxu0
      %v939 = vadd.f32 %v733, %v938
      %v940 = vpop.f32.mrb[0].mxu0
      %941 = vmatprep.mubr.f32.mxu0 0.0
      %942 = vmatmul.mubr.f32.gmra.mrb[0].mxu0 %v764
      %v943 = vpop.f32.mrb[0].mxu0
      %v944 = vadd.f32 %v733, %v943
      %v945 = vpop.f32.mrb[0].mxu0
      %946 = vmatprep.mubr.f32.mxu0 0.0
      %947 = vmatmul.mubr.f32.gmra.mrb[0].mxu0 %v767
      %v948 = vpop.f32.mrb[0].mxu0
      %v949 = vadd.f32 %v733, %v948
      %v950 = vpop.f32.mrb[0].mxu0
      %951 = vmatprep.mubr.f32.mxu0 0.0
      %952 = vmatmul.mubr.f32.gmra.mrb[0].mxu0 %v770
      %v953 = vpop.f32.mrb[0].mxu0
      %v954 = vadd.f32 %v733, %v953
      %v955 = vpop.f32.mrb[0].mxu0
      %956 = vmatprep.mubr.f32.mxu0 0.0
      %957 = vmatmul.mubr.f32.gmra.mrb[0].mxu0 %v773
      %v958 = vpop.f32.mrb[0].mxu0
      %v959 = vadd.f32 %v733, %v958
      %v960 = vpop.f32.mrb[0].mxu0
      %961 = vmatprep.mubr.f32.mxu0 0.0
      %962 = vmatmul.mubr.f32.gmra.mrb[0].mxu0 %v776
      %v963 = vpop.f32.mrb[0].mxu0
      %v964 = vadd.f32 %v733, %v963
      %v965 = vpop.f32.mrb[0].mxu0
      %966 = vmatprep.mubr.f32.mxu0 0.0
      %967 = vmatmul.mubr.f32.gmra.mrb[0].mxu0 %v779
      %v968 = vpop.f32.mrb[0].mxu0
      %v969 = vadd.f32 %v733, %v968
      %v970 = vpop.f32.mrb[0].mxu0
      %971 = vmatprep.mubr.f32.mxu0 0.0
      %972 = vmatmul.mubr.f32.gmra.mrb[0].mxu0 %v782
      %v973 = vpop.f32.mrb[0].mxu0
      %v974 = vadd.f32 %v733, %v973
      %v975 = vpop.f32.mrb[0].mxu0
      %976 = vmatprep.mubr.f32.mxu0 0.0
      %977 = vmatmul.mubr.f32.gmra.mrb[0].mxu0 %v785
      %v978 = vpop.f32.mrb[0].mxu0
      %v979 = vadd.f32 %v733, %v978
      %v980 = vpop.f32.mrb[0].mxu0
      %981 = vmatprep.mubr.f32.mxu0 0.0
      %982 = vmatmul.mubr.f32.gmra.mrb[0].mxu0 %v788
      %v983 = vpop.f32.mrb[0].mxu0
      %v984 = vadd.f32 %v733, %v983
      %v985 = vpop.f32.mrb[0].mxu0
      %986 = vmatprep.mubr.f32.mxu0 0.0
      %987 = vmatmul.mubr.f32.gmra.mrb[0].mxu0 %v791
      %v988 = vpop.f32.mrb[0].mxu0
      %v989 = vadd.f32 %v733, %v988
      %v990 = vpop.f32.mrb[0].mxu0
      %991 = vmatprep.mubr.f32.mxu0 0.0
      %992 = vmatmul.mubr.f32.gmra.mrb[0].mxu0 %v794
      %v993 = vpop.f32.mrb[0].mxu0
      %v994 = vadd.f32 %v733, %v993
      %v995 = vpop.f32.mrb[0].mxu0
      %996 = vmatprep.mubr.f32.mxu0 0.0
      %997 = vmatmul.mubr.f32.gmra.mrb[0].mxu0 %v797
      %v998 = vpop.f32.mrb[0].mxu0
      %v999 = vadd.f32 %v733, %v998
      %v1000 = vpop.f32.mrb[0].mxu0
      %1001 = vmatprep.mubr.f32.mxu0 0.0
      %1002 = vmatmul.mubr.f32.gmra.mrb[0].mxu0 %v800
      %v1003 = vpop.f32.mrb[0].mxu0
      %v1004 = vadd.f32 %v733, %v1003
      %v1005 = vpop.f32.mrb[0].mxu0
      %1006 = vmatprep.mubr.f32.mxu0 0.0
      %1007 = vmatmul.mubr.f32.gmra.mrb[0].mxu0 %v803
      %v1008 = vpop.f32.mrb[0].mxu0
      %v1009 = vadd.f32 %v733, %v1008
      %v1010 = vpop.f32.mrb[0].mxu0
      %1011 = vmatprep.mubr.f32.mxu0 0.0
      %1012 = vmatmul.mubr.f32.gmra.mrb[0].mxu0 %v806
      %v1013 = vpop.f32.mrb[0].mxu0
      %v1014 = vadd.f32 %v733, %v1013
      %v1015 = vpop.f32.mrb[0].mxu0
      %1016 = vmatprep.mubr.f32.mxu0 0.0
      %1017 = vmatmul.mubr.f32.gmra.mrb[0].mxu0 %v809
      %v1018 = vpop.f32.mrb[0].mxu0
      %v1019 = vadd.f32 %v733, %v1018
      %v1020 = vpop.f32.mrb[0].mxu0
      %1021 = vmatprep.mubr.f32.mxu0 0.0
      %1022 = vmatmul.mubr.f32.gmra.mrb[0].mxu0 %v812
      %v1023 = vpop.f32.mrb[0].mxu0
      %v1024 = vadd.f32 %v733, %v1023
      %v1025 = vpop.f32.mrb[0].mxu0
      %1026 = vmatprep.mubr.f32.mxu0 0.0
      %1027 = vmatmul.mubr.f32.gmra.mrb[0].mxu0 %v815
      %v1028 = vpop.f32.mrb[0].mxu0
      %v1029 = vadd.f32 %v733, %v1028
      %v1030 = vpop.f32.mrb[0].mxu0
      %1031 = vmatprep.mubr.f32.mxu0 0.0
      %1032 = vmatmul.mubr.f32.gmra.mrb[0].mxu0 %v818
      %v1033 = vpop.f32.mrb[0].mxu0
      %v1034 = vadd.f32 %v733, %v1033
      %v1035 = vpop.f32.mrb[0].mxu0
      %1036 = vmatprep.mubr.f32.mxu0 0.0
      %1037 = vmatmul.mubr.f32.gmra.mrb[0].mxu0 %v821
      %v1038 = vpop.f32.mrb[0].mxu0
      %v1039 = vadd.f32 %v733, %v1038
      %v1040 = vpop.f32.mrb[0].mxu0
      %1041 = vmatprep.mubr.f32.mxu0 0.0
      %1042 = vmatmul.mubr.f32.gmra.mrb[0].mxu0 %v824
      %v1043 = vpop.f32.mrb[0].mxu0
      %v1044 = vadd.f32 %v733, %v1043
      %v1045 = vpop.f32.mrb[0].mxu0
      %1046 = vmatprep.mubr.f32.mxu0 0.0
      %1047 = vmatmul.mubr.f32.gmra.mrb[0].mxu0 %v827
      %v1048 = vpop.f32.mrb[0].mxu0
      %v1049 = vadd.f32 %v733, %v1048
      %v1050 = vpop.f32.mrb[0].mxu0
      %1051 = vmatprep.mubr.f32.mxu0 0.0
      %1052 = vmatmul.mubr.f32.gmra.mrb[0].mxu0 %v830
      %v1053 = vpop.f32.mrb[0].mxu0
      %v1054 = vadd.f32 %v733, %v1053
      %v1055 = vpop.f32.mrb[0].mxu0
      %1056 = vdwg.mxu0
      %v1057 = vmax.f32 %v899, 0.0
      %v1058 = vmax.f32 %v904, 0.0
      %v1059 = vmax.f32 %v909, 0.0
      %v1060 = vmax.f32 %v914, 0.0
      %v1061 = vmax.f32 %v919, 0.0
      %v1062 = vmax.f32 %v924, 0.0
      %v1063 = vmax.f32 %v929, 0.0
      %v1064 = vmax.f32 %v934, 0.0
      %v1065 = vmax.f32 %v939, 0.0
      %v1066 = vmax.f32 %v944, 0.0
      %v1067 = vmax.f32 %v949, 0.0
      %v1068 = vmax.f32 %v954, 0.0
      %v1069 = vmax.f32 %v959, 0.0
      %v1070 = vmax.f32 %v964, 0.0
      %v1071 = vmax.f32 %v969, 0.0
      %v1072 = vmax.f32 %v974, 0.0
      %v1073 = vmax.f32 %v979, 0.0
      %v1074 = vmax.f32 %v984, 0.0
      %v1075 = vmax.f32 %v989, 0.0
      %v1076 = vmax.f32 %v994, 0.0
      %v1077 = vmax.f32 %v999, 0.0
      %v1078 = vmax.f32 %v1004, 0.0
      %v1079 = vmax.f32 %v1009, 0.0
      %v1080 = vmax.f32 %v1014, 0.0
      %v1081 = vmax.f32 %v1019, 0.0
      %v1082 = vmax.f32 %v1024, 0.0
      %v1083 = vmax.f32 %v1029, 0.0
      %v1084 = vmax.f32 %v1034, 0.0
      %v1085 = vmax.f32 %v1039, 0.0
      %v1086 = vmax.f32 %v1044, 0.0
      %v1087 = vmax.f32 %v1049, 0.0
      %v1088 = vmax.f32 %v1054, 0.0
      %v1089 = vld [vmem:[%s6] sm:$0xff]
      %v1090 = vld [vmem:[%s6 + $0x8] sm:$0xff]
      %v1091 = vld [vmem:[%s6 + $0x10] sm:$0xff]
      %v1092 = vld [vmem:[%s6 + $0x18] sm:$0xff]
      %v1093 = vld [vmem:[#allocation2] sm:$0x1]
      %v1095 = vlaneseq
      %v1096 = vshrl.u32 %v1095, 7
      %v1097 = vsub.s32 0, %v1096
      %v1098 = vrot.slane %v1093, %v1097
      %v1101 = vsel %vm735, %v1057, 0
      %v1104 = vsel %vm735, %v1058, 0
      %v1107 = vsel %vm735, %v1059, 0
      %v1110 = vsel %vm735, %v1060, 0
      %v1113 = vsel %vm735, %v1061, 0
      %v1116 = vsel %vm735, %v1062, 0
      %v1119 = vsel %vm735, %v1063, 0
      %v1122 = vsel %vm735, %v1064, 0
      %v1125 = vsel %vm735, %v1065, 0
      %v1128 = vsel %vm735, %v1066, 0
      %v1131 = vsel %vm735, %v1067, 0
      %v1134 = vsel %vm735, %v1068, 0
      %v1137 = vsel %vm735, %v1069, 0
      %v1140 = vsel %vm735, %v1070, 0
      %v1143 = vsel %vm735, %v1071, 0
      %v1146 = vsel %vm735, %v1072, 0
      %v1149 = vsel %vm735, %v1073, 0
      %v1152 = vsel %vm735, %v1074, 0
      %v1155 = vsel %vm735, %v1075, 0
      %v1158 = vsel %vm735, %v1076, 0
      %v1161 = vsel %vm735, %v1077, 0
      %v1164 = vsel %vm735, %v1078, 0
      %v1167 = vsel %vm735, %v1079, 0
      %v1170 = vsel %vm735, %v1080, 0
      %v1173 = vsel %vm735, %v1081, 0
      %v1176 = vsel %vm735, %v1082, 0
      %v1179 = vsel %vm735, %v1083, 0
      %v1182 = vsel %vm735, %v1084, 0
      %v1185 = vsel %vm735, %v1085, 0
      %v1188 = vsel %vm735, %v1086, 0
      %v1191 = vsel %vm735, %v1087, 0
      %v1194 = vsel %vm735, %v1088, 0
      %1196 = vmatprep.subr.mxu0 0.0
      %1197 = vmatpush1.msra.mxu0 %v1089
      %1198 = vmatprep.subr.mxu0 0.0
      %1199 = vmatpush1.msra.mxu0 %v1090
      %1200 = vmatprep.subr.mxu0 0.0
      %1201 = vmatpush1.msra.mxu0 %v1091
      %1202 = vmatprep.subr.mxu0 0.0
      %1203 = vmatpush1.msra.mxu0 %v1092
      %1204 = vmatprep.subr.mxu0 0.0
      %1205 = vmatpush1.msra.mxu0 0.0
      %1206 = vmatprep.subr.mxu0 0.0
      %1207 = vmatpush1.msra.mxu0 0.0
      %1208 = vmatprep.subr.mxu0 0.0
      %1209 = vmatpush1.msra.mxu0 0.0
      %1210 = vmatprep.subr.mxu0 0.0
      %1211 = vmatpush1.msra.mxu0 0.0
      %1212 = vmatprep.subr.mxu0 0.0
      %1213 = vmatpush1.msra.mxu0 0.0
      %1214 = vmatprep.subr.mxu0 0.0
      %1215 = vmatpush1.msra.mxu0 0.0
      %1216 = vmatprep.subr.mxu0 0.0
      %1217 = vmatpush1.msra.mxu0 0.0
      %1218 = vmatprep.subr.mxu0 0.0
      %1219 = vmatpush1.msra.mxu0 0.0
      %1220 = vmatprep.subr.mxu0 0.0
      %1221 = vmatpush1.msra.mxu0 0.0
      %1222 = vmatprep.subr.mxu0 0.0
      %1223 = vmatpush1.msra.mxu0 0.0
      %1224 = vmatprep.subr.mxu0 0.0
      %1225 = vmatpush1.msra.mxu0 0.0
      %1226 = vmatprep.subr.mxu0 0.0
      %1227 = vmatpush1.msra.mxu0 0.0
      %1228 = vmatprep.subr.mxu0 0.0
      %1229 = vmatpush1.msra.mxu0 0.0
      %1230 = vmatprep.subr.mxu0 0.0
      %1231 = vmatpush1.msra.mxu0 0.0
      %1232 = vmatprep.subr.mxu0 0.0
      %1233 = vmatpush1.msra.mxu0 0.0
      %1234 = vmatprep.subr.mxu0 0.0
      %1235 = vmatpush1.msra.mxu0 0.0
      %1236 = vmatprep.subr.mxu0 0.0
      %1237 = vmatpush1.msra.mxu0 0.0
      %1238 = vmatprep.subr.mxu0 0.0
      %1239 = vmatpush1.msra.mxu0 0.0
      %1240 = vmatprep.subr.mxu0 0.0
      %1241 = vmatpush1.msra.mxu0 0.0
      %1242 = vmatprep.subr.mxu0 0.0
      %1243 = vmatpush1.msra.mxu0 0.0
      %1244 = vmatprep.subr.mxu0 0.0
      %1245 = vmatpush1.msra.mxu0 0.0
      %1246 = vmatprep.subr.mxu0 0.0
      %1247 = vmatpush1.msra.mxu0 0.0
      %1248 = vmatprep.subr.mxu0 0.0
      %1249 = vmatpush1.msra.mxu0 0.0
      %1250 = vmatprep.subr.mxu0 0.0
      %1251 = vmatpush1.msra.mxu0 0.0
      %1252 = vmatprep.subr.mxu0 0.0
      %1253 = vmatpush1.msra.mxu0 0.0
      %1254 = vmatprep.subr.mxu0 0.0
      %1255 = vmatpush1.msra.mxu0 0.0
      %1256 = vmatprep.subr.mxu0 0.0
      %1257 = vmatpush1.msra.mxu0 0.0
      %1258 = vmatprep.subr.mxu0 0.0
      %1259 = vmatpush1.msra.mxu0 0.0
      %1260 = vmatprep.mubr.f32.mxu0 0.0
      %1261 = vmatmul.mubr.f32.gmra.mrb[0].mxu0 %v1101
      %v1262 = vpop.f32.mrb[0].mxu0
      %v1263 = vadd.f32 %v1098, %v1262
      %v1264 = vpop.f32.mrb[0].mxu0
      %1265 = vmatprep.mubr.f32.mxu0 0.0
      %1266 = vmatmul.mubr.f32.gmra.mrb[0].mxu0 %v1104
      %v1267 = vpop.f32.mrb[0].mxu0
      %v1268 = vadd.f32 %v1098, %v1267
      %v1269 = vpop.f32.mrb[0].mxu0
      %1270 = vmatprep.mubr.f32.mxu0 0.0
      %1271 = vmatmul.mubr.f32.gmra.mrb[0].mxu0 %v1107
      %v1272 = vpop.f32.mrb[0].mxu0
      %v1273 = vadd.f32 %v1098, %v1272
      %v1274 = vpop.f32.mrb[0].mxu0
      %1275 = vmatprep.mubr.f32.mxu0 0.0
      %1276 = vmatmul.mubr.f32.gmra.mrb[0].mxu0 %v1110
      %v1277 = vpop.f32.mrb[0].mxu0
      %v1278 = vadd.f32 %v1098, %v1277
      %v1279 = vpop.f32.mrb[0].mxu0
      %1280 = vmatprep.mubr.f32.mxu0 0.0
      %1281 = vmatmul.mubr.f32.gmra.mrb[0].mxu0 %v1113
      %v1282 = vpop.f32.mrb[0].mxu0
      %v1283 = vadd.f32 %v1098, %v1282
      %v1284 = vpop.f32.mrb[0].mxu0
      %1285 = vmatprep.mubr.f32.mxu0 0.0
      %1286 = vmatmul.mubr.f32.gmra.mrb[0].mxu0 %v1116
      %v1287 = vpop.f32.mrb[0].mxu0
      %v1288 = vadd.f32 %v1098, %v1287
      %v1289 = vpop.f32.mrb[0].mxu0
      %1290 = vmatprep.mubr.f32.mxu0 0.0
      %1291 = vmatmul.mubr.f32.gmra.mrb[0].mxu0 %v1119
      %v1292 = vpop.f32.mrb[0].mxu0
      %v1293 = vadd.f32 %v1098, %v1292
      %v1294 = vpop.f32.mrb[0].mxu0
      %1295 = vmatprep.mubr.f32.mxu0 0.0
      %1296 = vmatmul.mubr.f32.gmra.mrb[0].mxu0 %v1122
      %v1297 = vpop.f32.mrb[0].mxu0
      %v1298 = vadd.f32 %v1098, %v1297
      %v1299 = vpop.f32.mrb[0].mxu0
      %1300 = vmatprep.mubr.f32.mxu0 0.0
      %1301 = vmatmul.mubr.f32.gmra.mrb[0].mxu0 %v1125
      %v1302 = vpop.f32.mrb[0].mxu0
      %v1303 = vadd.f32 %v1098, %v1302
      %v1304 = vpop.f32.mrb[0].mxu0
      %1305 = vmatprep.mubr.f32.mxu0 0.0
      %1306 = vmatmul.mubr.f32.gmra.mrb[0].mxu0 %v1128
      %v1307 = vpop.f32.mrb[0].mxu0
      %v1308 = vadd.f32 %v1098, %v1307
      %v1309 = vpop.f32.mrb[0].mxu0
      %1310 = vmatprep.mubr.f32.mxu0 0.0
      %1311 = vmatmul.mubr.f32.gmra.mrb[0].mxu0 %v1131
      %v1312 = vpop.f32.mrb[0].mxu0
      %v1313 = vadd.f32 %v1098, %v1312
      %v1314 = vpop.f32.mrb[0].mxu0
      %1315 = vmatprep.mubr.f32.mxu0 0.0
      %1316 = vmatmul.mubr.f32.gmra.mrb[0].mxu0 %v1134
      %v1317 = vpop.f32.mrb[0].mxu0
      %v1318 = vadd.f32 %v1098, %v1317
      %v1319 = vpop.f32.mrb[0].mxu0
      %1320 = vmatprep.mubr.f32.mxu0 0.0
      %1321 = vmatmul.mubr.f32.gmra.mrb[0].mxu0 %v1137
      %v1322 = vpop.f32.mrb[0].mxu0
      %v1323 = vadd.f32 %v1098, %v1322
      %v1324 = vpop.f32.mrb[0].mxu0
      %1325 = vmatprep.mubr.f32.mxu0 0.0
      %1326 = vmatmul.mubr.f32.gmra.mrb[0].mxu0 %v1140
      %v1327 = vpop.f32.mrb[0].mxu0
      %v1328 = vadd.f32 %v1098, %v1327
      %v1329 = vpop.f32.mrb[0].mxu0
      %1330 = vmatprep.mubr.f32.mxu0 0.0
      %1331 = vmatmul.mubr.f32.gmra.mrb[0].mxu0 %v1143
      %v1332 = vpop.f32.mrb[0].mxu0
      %v1333 = vadd.f32 %v1098, %v1332
      %v1334 = vpop.f32.mrb[0].mxu0
      %1335 = vmatprep.mubr.f32.mxu0 0.0
      %1336 = vmatmul.mubr.f32.gmra.mrb[0].mxu0 %v1146
      %v1337 = vpop.f32.mrb[0].mxu0
      %v1338 = vadd.f32 %v1098, %v1337
      %v1339 = vpop.f32.mrb[0].mxu0
      %1340 = vmatprep.mubr.f32.mxu0 0.0
      %1341 = vmatmul.mubr.f32.gmra.mrb[0].mxu0 %v1149
      %v1342 = vpop.f32.mrb[0].mxu0
      %v1343 = vadd.f32 %v1098, %v1342
      %v1344 = vpop.f32.mrb[0].mxu0
      %1345 = vmatprep.mubr.f32.mxu0 0.0
      %1346 = vmatmul.mubr.f32.gmra.mrb[0].mxu0 %v1152
      %v1347 = vpop.f32.mrb[0].mxu0
      %v1348 = vadd.f32 %v1098, %v1347
      %v1349 = vpop.f32.mrb[0].mxu0
      %1350 = vmatprep.mubr.f32.mxu0 0.0
      %1351 = vmatmul.mubr.f32.gmra.mrb[0].mxu0 %v1155
      %v1352 = vpop.f32.mrb[0].mxu0
      %v1353 = vadd.f32 %v1098, %v1352
      %v1354 = vpop.f32.mrb[0].mxu0
      %1355 = vmatprep.mubr.f32.mxu0 0.0
      %1356 = vmatmul.mubr.f32.gmra.mrb[0].mxu0 %v1158
      %v1357 = vpop.f32.mrb[0].mxu0
      %v1358 = vadd.f32 %v1098, %v1357
      %v1359 = vpop.f32.mrb[0].mxu0
      %1360 = vmatprep.mubr.f32.mxu0 0.0
      %1361 = vmatmul.mubr.f32.gmra.mrb[0].mxu0 %v1161
      %v1362 = vpop.f32.mrb[0].mxu0
      %v1363 = vadd.f32 %v1098, %v1362
      %v1364 = vpop.f32.mrb[0].mxu0
      %1365 = vmatprep.mubr.f32.mxu0 0.0
      %1366 = vmatmul.mubr.f32.gmra.mrb[0].mxu0 %v1164
      %v1367 = vpop.f32.mrb[0].mxu0
      %v1368 = vadd.f32 %v1098, %v1367
      %v1369 = vpop.f32.mrb[0].mxu0
      %1370 = vmatprep.mubr.f32.mxu0 0.0
      %1371 = vmatmul.mubr.f32.gmra.mrb[0].mxu0 %v1167
      %v1372 = vpop.f32.mrb[0].mxu0
      %v1373 = vadd.f32 %v1098, %v1372
      %v1374 = vpop.f32.mrb[0].mxu0
      %1375 = vmatprep.mubr.f32.mxu0 0.0
      %1376 = vmatmul.mubr.f32.gmra.mrb[0].mxu0 %v1170
      %v1377 = vpop.f32.mrb[0].mxu0
      %v1378 = vadd.f32 %v1098, %v1377
      %v1379 = vpop.f32.mrb[0].mxu0
      %1380 = vmatprep.mubr.f32.mxu0 0.0
      %1381 = vmatmul.mubr.f32.gmra.mrb[0].mxu0 %v1173
      %v1382 = vpop.f32.mrb[0].mxu0
      %v1383 = vadd.f32 %v1098, %v1382
      %v1384 = vpop.f32.mrb[0].mxu0
      %1385 = vmatprep.mubr.f32.mxu0 0.0
      %1386 = vmatmul.mubr.f32.gmra.mrb[0].mxu0 %v1176
      %v1387 = vpop.f32.mrb[0].mxu0
      %v1388 = vadd.f32 %v1098, %v1387
      %v1389 = vpop.f32.mrb[0].mxu0
      %1390 = vmatprep.mubr.f32.mxu0 0.0
      %1391 = vmatmul.mubr.f32.gmra.mrb[0].mxu0 %v1179
      %v1392 = vpop.f32.mrb[0].mxu0
      %v1393 = vadd.f32 %v1098, %v1392
      %v1394 = vpop.f32.mrb[0].mxu0
      %1395 = vmatprep.mubr.f32.mxu0 0.0
      %1396 = vmatmul.mubr.f32.gmra.mrb[0].mxu0 %v1182
      %v1397 = vpop.f32.mrb[0].mxu0
      %v1398 = vadd.f32 %v1098, %v1397
      %v1399 = vpop.f32.mrb[0].mxu0
      %1400 = vmatprep.mubr.f32.mxu0 0.0
      %1401 = vmatmul.mubr.f32.gmra.mrb[0].mxu0 %v1185
      %v1402 = vpop.f32.mrb[0].mxu0
      %v1403 = vadd.f32 %v1098, %v1402
      %v1404 = vpop.f32.mrb[0].mxu0
      %1405 = vmatprep.mubr.f32.mxu0 0.0
      %1406 = vmatmul.mubr.f32.gmra.mrb[0].mxu0 %v1188
      %v1407 = vpop.f32.mrb[0].mxu0
      %v1408 = vadd.f32 %v1098, %v1407
      %v1409 = vpop.f32.mrb[0].mxu0
      %1410 = vmatprep.mubr.f32.mxu0 0.0
      %1411 = vmatmul.mubr.f32.gmra.mrb[0].mxu0 %v1191
      %v1412 = vpop.f32.mrb[0].mxu0
      %v1413 = vadd.f32 %v1098, %v1412
      %v1414 = vpop.f32.mrb[0].mxu0
      %1415 = vmatprep.mubr.f32.mxu0 0.0
      %1416 = vmatmul.mubr.f32.gmra.mrb[0].mxu0 %v1194
      %v1417 = vpop.f32.mrb[0].mxu0
      %v1418 = vadd.f32 %v1098, %v1417
      %v1419 = vpop.f32.mrb[0].mxu0
      %1420 = vdwg.mxu0
      %v1421 = vld [vmem:[%s319] sm:$0x3]
      %v1422 = vlaneseq
      %v1423 = vshrl.u32 %v1422, 7
      %v1424 = vadd.s32 %v1423, 8
      %v1425 = vlaneseq
      %v1426 = vand.u32 %v1425, 127
      %v1427 = vadd.s32 %v1426, 128
      %v1428 = vmul.u32 %v1423, 16
      %v1429 = vmul.u32 %v1424, 16
      %vm1430 = vcmp.ge.s32.totalorder %v1426, %v1428
      %vm1431 = vcmp.ge.s32.totalorder %v1427, %v1428
      %vm1432 = vcmp.ge.s32.totalorder %v1426, %v1429
      %vm1433 = vcmp.ge.s32.totalorder %v1427, %v1429
      %v1434 = vadd.s32 %v1423, 1
      %v1435 = vadd.s32 %v1424, 1
      %v1436 = vmul.u32 %v1434, 16
      %v1437 = vmul.u32 %v1435, 16
      %vm1438 = vcmp.lt.s32.totalorder %v1426, %v1436
      %vm1439 = vcmp.lt.s32.totalorder %v1427, %v1436
      %vm1440 = vcmp.lt.s32.totalorder %v1426, %v1437
      %vm1441 = vcmp.lt.s32.totalorder %v1427, %v1437
      %vm1442 = vmand %vm1430, %vm1438
      %vm1443 = vmand %vm1431, %vm1439
      %vm1444 = vmand %vm1432, %vm1440
      %vm1445 = vmand %vm1433, %vm1441
      %v1447 = vlaneseq
      %v1448 = vshrl.u32 %v1447, 7
      %v1449 = vsub.s32 0, %v1448
      %v1450 = vrot.slane %v1421, %v1449
      %v1451 = vlaneseq
      %v1452 = vshrl.u32 %v1451, 7
      %v1453 = vsub.s32 1, %v1452
      %v1454 = vrot.slane %v1421, %v1453
      %v1457 = vsel %vm1442, %v1450, 0.0
      %v1458 = vsel %vm1443, %v1454, 0.0
      %v1459 = vsel %vm1444, %v1450, 0.0
      %v1460 = vsel %vm1445, %v1454, 0.0
      %1461 = vmatprep.subr.mxu0 0.0
      %1462 = vmatpush1.msra.mxu0 %v1263
      %1463 = vmatprep.subr.mxu0 0.0
      %1464 = vmatpush1.msra.mxu0 %v1268
      %1465 = vmatprep.subr.mxu0 0.0
      %1466 = vmatpush1.msra.mxu0 %v1273
      %1467 = vmatprep.subr.mxu0 0.0
      %1468 = vmatpush1.msra.mxu0 %v1278
      %1469 = vmatprep.subr.mxu0 0.0
      %1470 = vmatpush1.msra.mxu0 %v1283
      %1471 = vmatprep.subr.mxu0 0.0
      %1472 = vmatpush1.msra.mxu0 %v1288
      %1473 = vmatprep.subr.mxu0 0.0
      %1474 = vmatpush1.msra.mxu0 %v1293
      %1475 = vmatprep.subr.mxu0 0.0
      %1476 = vmatpush1.msra.mxu0 %v1298
      %1477 = vmatprep.subr.mxu0 0.0
      %1478 = vmatpush1.msra.mxu0 %v1303
      %1479 = vmatprep.subr.mxu0 0.0
      %1480 = vmatpush1.msra.mxu0 %v1308
      %1481 = vmatprep.subr.mxu0 0.0
      %1482 = vmatpush1.msra.mxu0 %v1313
      %1483 = vmatprep.subr.mxu0 0.0
      %1484 = vmatpush1.msra.mxu0 %v1318
      %1485 = vmatprep.subr.mxu0 0.0
      %1486 = vmatpush1.msra.mxu0 %v1323
      %1487 = vmatprep.subr.mxu0 0.0
      %1488 = vmatpush1.msra.mxu0 %v1328
      %1489 = vmatprep.subr.mxu0 0.0
      %1490 = vmatpush1.msra.mxu0 %v1333
      %1491 = vmatprep.subr.mxu0 0.0
      %1492 = vmatpush1.msra.mxu0 %v1338
      %1493 = vmatprep.subr.mxu0 0.0
      %1494 = vmatpush1.msra.mxu0 %v1343
      %1495 = vmatprep.subr.mxu0 0.0
      %1496 = vmatpush1.msra.mxu0 %v1348
      %1497 = vmatprep.subr.mxu0 0.0
      %1498 = vmatpush1.msra.mxu0 %v1353
      %1499 = vmatprep.subr.mxu0 0.0
      %1500 = vmatpush1.msra.mxu0 %v1358
      %1501 = vmatprep.subr.mxu0 0.0
      %1502 = vmatpush1.msra.mxu0 %v1363
      %1503 = vmatprep.subr.mxu0 0.0
      %1504 = vmatpush1.msra.mxu0 %v1368
      %1505 = vmatprep.subr.mxu0 0.0
      %1506 = vmatpush1.msra.mxu0 %v1373
      %1507 = vmatprep.subr.mxu0 0.0
      %1508 = vmatpush1.msra.mxu0 %v1378
      %1509 = vmatprep.subr.mxu0 0.0
      %1510 = vmatpush1.msra.mxu0 %v1383
      %1511 = vmatprep.subr.mxu0 0.0
      %1512 = vmatpush1.msra.mxu0 %v1388
      %1513 = vmatprep.subr.mxu0 0.0
      %1514 = vmatpush1.msra.mxu0 %v1393
      %1515 = vmatprep.subr.mxu0 0.0
      %1516 = vmatpush1.msra.mxu0 %v1398
      %1517 = vmatprep.subr.mxu0 0.0
      %1518 = vmatpush1.msra.mxu0 %v1403
      %1519 = vmatprep.subr.mxu0 0.0
      %1520 = vmatpush1.msra.mxu0 %v1408
      %1521 = vmatprep.subr.mxu0 0.0
      %1522 = vmatpush1.msra.mxu0 %v1413
      %1523 = vmatprep.subr.mxu0 0.0
      %1524 = vmatpush1.msra.mxu0 %v1418
      %1525 = vmatprep.mubr.f32.mxu0 %v1458
      %1526 = vmatmul.mubr.f32.gmra.mrb[0].mxu0 %v1457
      %v1527 = vpop.f32.mrb[0].mxu0
      %v1528 = vadd.f32 0.0, %v1527
      %v1529 = vpop.f32.mrb[0].mxu0
      %1530 = vmatprep.mubr.f32.mxu0 %v1460
      %1531 = vmatmul.mubr.f32.gmra.mrb[0].mxu0 %v1459
      %v1532 = vpop.f32.mrb[0].mxu0
      %v1533 = vadd.f32 0.0, %v1532
      %v1534 = vpop.f32.mrb[0].mxu0
      %1535 = vdwg.mxu0
      %v1536 = vadd.f32 %v1457, %v1458
      %1537 = vadd.xlane.f32.xlu0 %v1536
      %v1538 = vpop.xlane.xlu0 %1537
      %v1539 = vadd.f32 %v1459, %v1460
      %1540 = vadd.xlane.f32.xlu0 %v1539
      %v1541 = vpop.xlane.xlu0 %1540
      %v1542 = vrcp.pop %v1538
      %v1543 = vrcp.pop %v1541
      %v1544 = vmul.f32 %v1528, %v1542
      %v1545 = vmul.f32 %v1533, %v1543
      %vm1546 = vcmask 7168
      %1547 = vst.msk [vmem:[%s324] sm:$0xff] %vm1546, %v1544
      %1548 = vst.msk [vmem:[%s324 + $0x8] sm:$0xff] %vm1546, %v1545
      %p1549 = scmp.lt.s32.totalorder %s21, 1
      %s1550 = scalar_select %p1549, %s21, 1
      %s1551 = smul.addr %s1550, 2
      %s1552 = smul.addr %s1551, 8
      %s1553 = scalar_lea.vmem %s8, %s1552
      // Predicated region
      $region53: #{simple_gnn_layer.1} parent=51 // pred_check
        %p1554 = pneg %p217
      $region54: #{simple_gnn_layer.1} parent=51 // pred_check_branch
        %1556 = sbr.rel (%p1554) target = $region56
      $region55: #{simple_gnn_layer.1} parent=51 // pred_region
        _
      $region56: #{simple_gnn_layer.1} parent=51 // pred_fallthru
        _
    $region52: #{simple_gnn_layer.1} parent=5 // pred_fallthru
      _
    %p1557 = scmp.le.s32.totalorder 2, %s16
    // Predicated region
    $region57: #{simple_gnn_layer.1} parent=5 // pred_check
      %p1558 = pneg %p1557
    $region58: #{simple_gnn_layer.1} parent=5 // pred_check_branch
      %1560 = sbr.rel (%p1558) target = $region60
    $region59: #{simple_gnn_layer.1} parent=5 // pred_region
      %s1561 = ssub.s32 %s16, 2
      // Predicated region
      $region61: #{simple_gnn_layer.1} parent=59 // pred_check
        %p1562 = pneg %p223
      $region62: #{simple_gnn_layer.1} parent=59 // pred_check_branch
        %1564 = sbr.rel (%p1562) target = $region64
      $region63: #{simple_gnn_layer.1} parent=59 // pred_region
        %p1565 = scmp.lt.s32.totalorder %s22, 1
        %s1566 = scalar_select %p1565, %s22, 1
        %s1567 = smul.addr %s1566, 2
        %s1568 = smul.addr %s1567, 8
        %s1569 = scalar_lea.vmem %s8, %s1568
      $region64: #{simple_gnn_layer.1} parent=59 // pred_fallthru
        _
    $region60: #{simple_gnn_layer.1} parent=5 // pred_fallthru
      _
  $region6: #{simple_gnn_layer.1} parent=0 // loop_footer
    %s20 = sadd.s32 1, %s16
  $region7: #{simple_gnn_layer.1} parent=0 // loop_footer_branch
    %15 = sbr.rel target = $region3
  $region8: #{simple_gnn_layer.1} parent=0 // loop_exit
    _

</llo_original>
